<compile_context>
chip_gen: v5e
topology: v5e:2x2
jax: 0.10.0
libtpu: 0.0.40
codegen_flags: <defaults>
</compile_context>

<pallas_src>
import math

import jax
import jax.numpy as jnp
from jax import lax
from jax.experimental import pallas as pl
from jax.experimental.pallas import tpu as pltpu


def _make_attention_kernel(n_heads, d_k, tq, shared_qkv):
    """Fused QKV projection + attention + output projection.

    One grid step = one (batch element, query tile).  All matmuls feed the MXU
    with bf16 operands and f32 accumulation; softmax math stays in f32.
    """
    # A @ B.T without materializing the transpose: contract last dims of both.
    dn_last_last = (((1,), (1,)), ((), ()))

    def kernel(*refs):
        if shared_qkv:
            (x_ref,
             wq_ref, bq_ref, wk_ref, bk_ref, wv_ref, bv_ref, wo_ref, bo_ref,
             out_ref, kproj_ref, vproj_ref, ctx_ref) = refs
            xk_ref = xv_ref = x_ref
        else:
            (xq_ref, xk_ref, xv_ref,
             wq_ref, bq_ref, wk_ref, bk_ref, wv_ref, bv_ref, wo_ref, bo_ref,
             out_ref, kproj_ref, vproj_ref, ctx_ref) = refs

        qi = pl.program_id(1)

        # ---- K / V projections: once per batch element, cached in bf16 VMEM
        #      scratch; reused by every query tile (qi is "arbitrary"). -------
        @pl.when(qi == 0)
        def _():
            xk = xk_ref[0].astype(jnp.bfloat16)                         # (S, D)
            k = jnp.dot(xk, wk_ref[...], preferred_element_type=jnp.float32)
            kproj_ref[...] = (k + bk_ref[...]).astype(jnp.bfloat16)
            xv = xv_ref[0].astype(jnp.bfloat16)                         # (S, D)
            v = jnp.dot(xv, wv_ref[...], preferred_element_type=jnp.float32)
            vproj_ref[...] = (v + bv_ref[...]).astype(jnp.bfloat16)

        # ---- Q projection for this query tile (1/sqrt(d_k) folded in). ------
        if shared_qkv:
            start = pl.multiple_of(qi * tq, tq)
            xq = x_ref[0, pl.ds(start, tq), :].astype(jnp.bfloat16)     # (tq, D)
        else:
            xq = xq_ref[0].astype(jnp.bfloat16)                         # (tq, D)
        q_full = (jnp.dot(xq, wq_ref[...], preferred_element_type=jnp.float32)
                  + bq_ref[...])                                        # (tq, D) f32

        k_full = kproj_ref[...]                                         # (S, D) bf16
        v_full = vproj_ref[...]                                         # (S, D) bf16

        # ---- Per-head attention.  Heads are statically unrolled so all lane
        #      slices / stores use STATIC offsets (dynamic lane slicing is
        #      fragile/slow on TPU); each head's ctx goes lane-dense into the
        #      (tq, D) scratch so one full-width Wo matmul finishes the layer.
        #      TODO(synk): for very large H*S move heads to an inner
        #      "arbitrary" grid axis to bound live ranges further. ------------
        for h in range(n_heads):
            lo, hi = h * d_k, (h + 1) * d_k
            q_h = q_full[:, lo:hi].astype(jnp.bfloat16)                 # (tq, d_k)
            k_h = k_full[:, lo:hi]                                      # (S, d_k)
            v_h = v_full[:, lo:hi]                                      # (S, d_k)

            s = lax.dot_general(q_h, k_h, dn_last_last,
                                preferred_element_type=jnp.float32)     # (tq, S)
            # Numerically stable f32 softmax with an exact divide.
            s = s - jnp.max(s, axis=-1, keepdims=True)
            p = jnp.exp(s)
            inv = 1.0 / jnp.sum(p, axis=-1, keepdims=True)
            attn = (p * inv).astype(jnp.bfloat16)

            ctx_ref[:, lo:hi] = jnp.dot(
                attn, v_h, preferred_element_type=jnp.float32).astype(jnp.bfloat16)

        # ---- Single full-width output projection: concat(heads) @ Wo.T + bo.
        y = (jnp.dot(ctx_ref[...], wo_ref[...], preferred_element_type=jnp.float32)
             + bo_ref[...])
        out_ref[0] = y.astype(out_ref.dtype)

    return kernel


def _vmem_limit_bytes():
    """~80% of the part's VMEM, capped at 100 MiB (v7x 64 MiB -> ~51 MiB,
    v5e/v6e 128 MiB -> 100 MiB)."""
    cap = 64 * 1024 * 1024  # conservative fallback (v7x-sized part)
    try:
        cap = int(pltpu.get_tpu_info().vmem_capacity_bytes)
    except Exception:
        pass
    return int(min(cap * 0.8, 100 * 1024 * 1024))


def _pick_q_tile(s_q, s_kv, vmem_limit_bytes):
    """Query-tile size: a 128-aligned divisor of S_q (v5e MXU wants M >= 128),
    sized so the live f32 (tq, S_kv) score block stays within ~1/4 of the VMEM
    budget, capped at 2048 (v6e guidance)."""
    if s_q % 128 != 0:
        # Small / non-128-aligned sequences: no query tiling.
        # TODO(synk): pad + mask the query axis for long, non-128-aligned S.
        return s_q
    cap = (vmem_limit_bytes // 4) // (4 * max(s_kv, 128))
    cap = max(128, min(2048, cap))
    tq, cand = 128, 256
    while cand <= min(s_q, cap):
        if s_q % cand == 0:
            tq = cand
        cand += 128
    return tq


def instrumented_attention(query, key, value, params, n_heads, q_tile=None):
    B, S_q, D = query.shape
    S_kv = key.shape[1]
    assert value.shape == key.shape
    assert D % n_heads == 0
    d_k = D // n_heads
    scale = 1.0 / math.sqrt(d_k)

    shared_qkv = (key is query) and (value is query)

    # One-time weight re-layout (host/XLA side): transpose nn.Linear (out,in)
    # weights to right-multiply form, fold the score scale into Wq/bq, and cast
    # MXU operands to bf16.  Biases stay f32 (added after f32 accumulation).
    wq = (params["wq"].T * scale).astype(jnp.bfloat16)
    wk = params["wk"].T.astype(jnp.bfloat16)
    wv = params["wv"].T.astype(jnp.bfloat16)
    wo = params["wo"].T.astype(jnp.bfloat16)
    bq = (params["bq"] * scale).reshape(1, D).astype(jnp.float32)
    bk = params["bk"].reshape(1, D).astype(jnp.float32)
    bv = params["bv"].reshape(1, D).astype(jnp.float32)
    bo = params["bo"].reshape(1, D).astype(jnp.float32)

    vmem_limit = _vmem_limit_bytes()
    if q_tile is None:
        tq = _pick_q_tile(S_q, S_kv, vmem_limit)
    else:
        tq = q_tile
        assert S_q % tq == 0 and (tq % 8 == 0 or tq == S_q)
    num_q = S_q // tq

    kernel = _make_attention_kernel(n_heads, d_k, tq, shared_qkv)

    w_spec = pl.BlockSpec((D, D), lambda b, qi: (0, 0))
    b_spec = pl.BlockSpec((1, D), lambda b, qi: (0, 0))
    q_spec = pl.BlockSpec((1, tq, D), lambda b, qi: (b, qi, 0))
    kv_spec = pl.BlockSpec((1, S_kv, D), lambda b, qi: (b, 0, 0))
    out_spec = pl.BlockSpec((1, tq, D), lambda b, qi: (b, qi, 0))

    if shared_qkv:
        in_specs = [kv_spec] + [w_spec, b_spec] * 4
        operands = (query, wq, bq, wk, bk, wv, bv, wo, bo)
    else:
        in_specs = [q_spec, kv_spec, kv_spec] + [w_spec, b_spec] * 4
        operands = (query, key, value, wq, bq, wk, bk, wv, bv, wo, bo)

    return pl.pallas_call(
        kernel,
        out_shape=jax.ShapeDtypeStruct((B, S_q, D), query.dtype),
        grid=(B, num_q),
        in_specs=in_specs,
        out_specs=out_spec,
        scratch_shapes=[
            pltpu.VMEM((S_kv, D), jnp.bfloat16),   # cached K projection
            pltpu.VMEM((S_kv, D), jnp.bfloat16),   # cached V projection
            pltpu.VMEM((tq, D), jnp.bfloat16),     # lane-dense concat(heads) ctx
        ],
        compiler_params=pltpu.CompilerParams(
            # B is independent ("parallel", megacore-shardable); qi carries the
            # cached-K/V scratch dependence -> "arbitrary" (sequential).
            dimension_semantics=("parallel", "arbitrary"),
            vmem_limit_bytes=vmem_limit,
        ),
    )(*operands)


def _reference_attention(query, key, value, params, n_heads):
    """Pure-JAX (f32) reference mirroring the PyTorch forward (mask=None)."""
    B, S_q, D = query.shape
    S_kv = key.shape[1]
    d_k = D // n_heads

    def lin(x, w, b):
        return x @ w.T + b

    q = lin(query, params["wq"], params["bq"]).reshape(B, S_q, n_heads, d_k).transpose(0, 2, 1, 3)
    k = lin(key, params["wk"], params["bk"]).reshape(B, S_kv, n_heads, d_k).transpose(0, 2, 1, 3)
    v = lin(value, params["wv"], params["bv"]).reshape(B, S_kv, n_heads, d_k).transpose(0, 2, 1, 3)

    scores = jnp.einsum("bhqd,bhkd->bhqk", q, k) / jnp.sqrt(jnp.float32(d_k))
    attn = jax.nn.softmax(scores, axis=-1)
    out = jnp.einsum("bhqk,bhkd->bhqd", attn, v)
    out = out.transpose(0, 2, 1, 3).reshape(B, S_q, D)
    return lin(out, params["wo"], params["bo"])


if __name__ == "__main__":
    B, S, D, H = 2, 8, 32, 4   # batch, seq, d_model, n_heads

    key0 = jax.random.PRNGKey(0)
    keys = jax.random.split(key0, 12)

    # Deterministic parameter init (Linear weights are (out, in), biases (D,)).
    init_scale = 1.0 / math.sqrt(D)
    params = {
        "wq": jax.random.normal(keys[0], (D, D), jnp.float32) * init_scale,
        "bq": jax.random.normal(keys[1], (D,), jnp.float32) * 0.1,
        "wk": jax.random.normal(keys[2], (D, D), jnp.float32) * init_scale,
        "bk": jax.random.normal(keys[3], (D,), jnp.float32) * 0.1,
        "wv": jax.random.normal(keys[4], (D, D), jnp.float32) * init_scale,
        "bv": jax.random.normal(keys[5], (D,), jnp.float32) * 0.1,
        "wo": jax.random.normal(keys[6], (D, D), jnp.float32) * init_scale,
        "bo": jax.random.normal(keys[7], (D,), jnp.float32) * 0.1,
    }

    query = jax.random.normal(keys[8], (B, S, D), jnp.float32)
    key_in = jax.random.normal(keys[9], (B, S, D), jnp.float32)
    value = jax.random.normal(keys[10], (B, S, D), jnp.float32)

    # bf16 MXU operands with f32 accumulation -> loosened tolerance vs f32 ref.
    tol = dict(atol=3e-2, rtol=3e-2)

    # 1) General path (distinct q/k/v), single query tile.
    out = jax.block_until_ready(instrumented_attention(query, key_in, value, params, H))
    ref = _reference_attention(query, key_in, value, params, H)
    assert out.shape == (B, S, D)
    assert jnp.allclose(out, ref, **tol), "general path mismatch vs JAX reference"

    # 2) Tiled query axis (exercises the qi==0 K/V scratch-caching path).
    S2 = 16
    q2 = jax.random.normal(keys[11], (B, S2, D), jnp.float32)
    k2 = jax.random.normal(keys[9], (B, S2, D), jnp.float32)
    v2 = jax.random.normal(keys[10], (B, S2, D), jnp.float32)
    out2 = jax.block_until_ready(instrumented_attention(q2, k2, v2, params, H, q_tile=8))
    ref2 = _reference_attention(q2, k2, v2, params, H)
    assert jnp.allclose(out2, ref2, **tol), "tiled path mismatch vs JAX reference"

    # 3) Shared self-attention fast path (query is key is value).
    out3 = jax.block_until_ready(instrumented_attention(q2, q2, q2, params, H, q_tile=8))
    ref3 = _reference_attention(q2, q2, q2, params, H)
    assert jnp.allclose(out3, ref3, **tol), "shared-qkv path mismatch vs JAX reference"

    print("KERNEL_OK")
</pallas_src>

<mosaic_0001>
module attributes {stable_mosaic.version = 11 : i64} {
  func.func @kernel(%arg0: i32, %arg1: i32, %arg2: memref<1x8x32xf32, #tpu.memory_space<vmem>>, %arg3: memref<1x8x32xf32, #tpu.memory_space<vmem>>, %arg4: memref<1x8x32xf32, #tpu.memory_space<vmem>>, %arg5: memref<32x32xbf16, #tpu.memory_space<vmem>>, %arg6: memref<1x32xf32, #tpu.memory_space<vmem>>, %arg7: memref<32x32xbf16, #tpu.memory_space<vmem>>, %arg8: memref<1x32xf32, #tpu.memory_space<vmem>>, %arg9: memref<32x32xbf16, #tpu.memory_space<vmem>>, %arg10: memref<1x32xf32, #tpu.memory_space<vmem>>, %arg11: memref<32x32xbf16, #tpu.memory_space<vmem>>, %arg12: memref<1x32xf32, #tpu.memory_space<vmem>>, %arg13: memref<1x8x32xf32, #tpu.memory_space<vmem>>, %arg14: memref<8x32xbf16, #tpu.memory_space<vmem>>, %arg15: memref<8x32xbf16, #tpu.memory_space<vmem>>, %arg16: memref<8x32xbf16, #tpu.memory_space<vmem>>) attributes {dimension_semantics = [#tpu.dimension_semantics<parallel>, #tpu.dimension_semantics<arbitrary>], iteration_bounds = array<i64: 2, 1>, scalar_prefetch = 0 : i64, scratch_operands = 3 : i64, tpu.core_type = #tpu.core_type<tc>, window_params = [{transform_indices = @transform_0, window_bounds = array<i64: 1, 8, 32>}, {transform_indices = @transform_1, window_bounds = array<i64: 1, 8, 32>}, {transform_indices = @transform_2, window_bounds = array<i64: 1, 8, 32>}, {pipeline_mode = #tpu.pipeline_mode<synchronous>, transform_indices = @transform_3, window_bounds = array<i64: 32, 32>}, {pipeline_mode = #tpu.pipeline_mode<synchronous>, transform_indices = @transform_4, window_bounds = array<i64: 1, 32>}, {pipeline_mode = #tpu.pipeline_mode<synchronous>, transform_indices = @transform_5, window_bounds = array<i64: 32, 32>}, {pipeline_mode = #tpu.pipeline_mode<synchronous>, transform_indices = @transform_6, window_bounds = array<i64: 1, 32>}, {pipeline_mode = #tpu.pipeline_mode<synchronous>, transform_indices = @transform_7, window_bounds = array<i64: 32, 32>}, {pipeline_mode = #tpu.pipeline_mode<synchronous>, transform_indices = @transform_8, window_bounds = array<i64: 1, 32>}, {pipeline_mode = #tpu.pipeline_mode<synchronous>, transform_indices = @transform_9, window_bounds = array<i64: 32, 32>}, {pipeline_mode = #tpu.pipeline_mode<synchronous>, transform_indices = @transform_10, window_bounds = array<i64: 1, 32>}, {transform_indices = @transform_11, window_bounds = array<i64: 1, 8, 32>}]} {
    %c0_i32 = arith.constant 0 : i32
    %0 = arith.cmpi eq, %arg1, %c0_i32 : i32
    %1 = arith.extui %0 : i1 to i32
    %c0_i32_0 = arith.constant 0 : i32
    %2 = arith.cmpi ne, %1, %c0_i32_0 : i32
    scf.if %2 {
      %c0_46 = arith.constant 0 : index
      %c0_47 = arith.constant 0 : index
      %c0_48 = arith.constant 0 : index
      %102 = vector.load %arg3[%c0_46, %c0_47, %c0_48] : memref<1x8x32xf32, #tpu.memory_space<vmem>>, vector<1x8x32xf32>
      %103 = vector.shape_cast %102 : vector<1x8x32xf32> to vector<8x32xf32>
      %104 = arith.truncf %103 : vector<8x32xf32> to vector<8x32xbf16>
      %c0_49 = arith.constant 0 : index
      %c0_50 = arith.constant 0 : index
      %105 = vector.load %arg7[%c0_49, %c0_50] : memref<32x32xbf16, #tpu.memory_space<vmem>>, vector<32x32xbf16>
      %cst_51 = arith.constant dense<0.000000e+00> : vector<8x32xf32>
      %106 = tpu.matmul %104, %105, %cst_51 {dimension_numbers = #tpu.dot_dimension_numbers<[1], [0], [0], [1], [0, 0, 1, 1], [], []>} : vector<8x32xbf16>, vector<32x32xbf16>, vector<8x32xf32> -> vector<8x32xf32>
      %c0_52 = arith.constant 0 : index
      %c0_53 = arith.constant 0 : index
      %107 = vector.load %arg8[%c0_52, %c0_53] : memref<1x32xf32, #tpu.memory_space<vmem>>, vector<1x32xf32>
      %108 = vector.broadcast %107 : vector<1x32xf32> to vector<8x32xf32>
      %109 = arith.addf %106, %108 : vector<8x32xf32>
      %110 = arith.truncf %109 : vector<8x32xf32> to vector<8x32xbf16>
      %c0_54 = arith.constant 0 : index
      %c0_55 = arith.constant 0 : index
      %111 = vector.load %arg14[%c0_54, %c0_55] : memref<8x32xbf16, #tpu.memory_space<vmem>>, vector<8x32xbf16>
      tpu.vector_store %arg14[%c0_54, %c0_55], %110 {strides = array<i32>} : memref<8x32xbf16, #tpu.memory_space<vmem>>, vector<8x32xbf16>,
      %c0_56 = arith.constant 0 : index
      %c0_57 = arith.constant 0 : index
      %c0_58 = arith.constant 0 : index
      %112 = vector.load %arg4[%c0_56, %c0_57, %c0_58] : memref<1x8x32xf32, #tpu.memory_space<vmem>>, vector<1x8x32xf32>
      %113 = vector.shape_cast %112 : vector<1x8x32xf32> to vector<8x32xf32>
      %114 = arith.truncf %113 : vector<8x32xf32> to vector<8x32xbf16>
      %c0_59 = arith.constant 0 : index
      %c0_60 = arith.constant 0 : index
      %115 = vector.load %arg9[%c0_59, %c0_60] : memref<32x32xbf16, #tpu.memory_space<vmem>>, vector<32x32xbf16>
      %cst_61 = arith.constant dense<0.000000e+00> : vector<8x32xf32>
      %116 = tpu.matmul %114, %115, %cst_61 {dimension_numbers = #tpu.dot_dimension_numbers<[1], [0], [0], [1], [0, 0, 1, 1], [], []>} : vector<8x32xbf16>, vector<32x32xbf16>, vector<8x32xf32> -> vector<8x32xf32>
      %c0_62 = arith.constant 0 : index
      %c0_63 = arith.constant 0 : index
      %117 = vector.load %arg10[%c0_62, %c0_63] : memref<1x32xf32, #tpu.memory_space<vmem>>, vector<1x32xf32>
      %118 = vector.broadcast %117 : vector<1x32xf32> to vector<8x32xf32>
      %119 = arith.addf %116, %118 : vector<8x32xf32>
      %120 = arith.truncf %119 : vector<8x32xf32> to vector<8x32xbf16>
      %c0_64 = arith.constant 0 : index
      %c0_65 = arith.constant 0 : index
      %121 = vector.load %arg15[%c0_64, %c0_65] : memref<8x32xbf16, #tpu.memory_space<vmem>>, vector<8x32xbf16>
      tpu.vector_store %arg15[%c0_64, %c0_65], %120 {strides = array<i32>} : memref<8x32xbf16, #tpu.memory_space<vmem>>, vector<8x32xbf16>,
    } else {
    }
    %c0 = arith.constant 0 : index
    %c0_1 = arith.constant 0 : index
    %c0_2 = arith.constant 0 : index
    %3 = vector.load %arg2[%c0, %c0_1, %c0_2] : memref<1x8x32xf32, #tpu.memory_space<vmem>>, vector<1x8x32xf32>
    %4 = vector.shape_cast %3 : vector<1x8x32xf32> to vector<8x32xf32>
    %5 = arith.truncf %4 : vector<8x32xf32> to vector<8x32xbf16>
    %c0_3 = arith.constant 0 : index
    %c0_4 = arith.constant 0 : index
    %6 = vector.load %arg5[%c0_3, %c0_4] : memref<32x32xbf16, #tpu.memory_space<vmem>>, vector<32x32xbf16>
    %cst = arith.constant dense<0.000000e+00> : vector<8x32xf32>
    %7 = tpu.matmul %5, %6, %cst {dimension_numbers = #tpu.dot_dimension_numbers<[1], [0], [0], [1], [0, 0, 1, 1], [], []>} : vector<8x32xbf16>, vector<32x32xbf16>, vector<8x32xf32> -> vector<8x32xf32>
    %c0_5 = arith.constant 0 : index
    %c0_6 = arith.constant 0 : index
    %8 = vector.load %arg6[%c0_5, %c0_6] : memref<1x32xf32, #tpu.memory_space<vmem>>, vector<1x32xf32>
    %9 = vector.broadcast %8 : vector<1x32xf32> to vector<8x32xf32>
    %10 = arith.addf %7, %9 : vector<8x32xf32>
    %c0_7 = arith.constant 0 : index
    %c0_8 = arith.constant 0 : index
    %11 = vector.load %arg14[%c0_7, %c0_8] : memref<8x32xbf16, #tpu.memory_space<vmem>>, vector<8x32xbf16>
    %c0_9 = arith.constant 0 : index
    %c0_10 = arith.constant 0 : index
    %12 = vector.load %arg15[%c0_9, %c0_10] : memref<8x32xbf16, #tpu.memory_space<vmem>>, vector<8x32xbf16>
    %13 = vector.extract_strided_slice %10 {offsets = [0, 0], sizes = [8, 8], strides = [1, 1]} : vector<8x32xf32> to vector<8x8xf32>
    %14 = arith.truncf %13 : vector<8x8xf32> to vector<8x8xbf16>
    %15 = vector.extract_strided_slice %11 {offsets = [0, 0], sizes = [8, 8], strides = [1, 1]} : vector<8x32xbf16> to vector<8x8xbf16>
    %16 = vector.extract_strided_slice %12 {offsets = [0, 0], sizes = [8, 8], strides = [1, 1]} : vector<8x32xbf16> to vector<8x8xbf16>
    %cst_11 = arith.constant dense<0.000000e+00> : vector<8x8xf32>
    %17 = tpu.matmul %14, %15, %cst_11 {dimension_numbers = #tpu.dot_dimension_numbers<[1], [1], [0], [0], [0, 0, 1, 0], [], []>} : vector<8x8xbf16>, vector<8x8xbf16>, vector<8x8xf32> -> vector<8x8xf32>
    %cst_12 = arith.constant dense<0xFF800000> : vector<8xf32>
    %18 = vector.multi_reduction <maximumf>, %17, %cst_12 [1] : vector<8x8xf32> to vector<8xf32>
    %19 = vector.shape_cast %18 : vector<8xf32> to vector<8x1xf32>
    %20 = vector.broadcast %19 : vector<8x1xf32> to vector<8x8xf32>
    %21 = arith.subf %17, %20 : vector<8x8xf32>
    %22 = math.exp %21 : vector<8x8xf32>
    %cst_13 = arith.constant dense<0.000000e+00> : vector<8xf32>
    %23 = vector.multi_reduction <add>, %22, %cst_13 [1] : vector<8x8xf32> to vector<8xf32>
    %24 = vector.shape_cast %23 : vector<8xf32> to vector<8x1xf32>
    %cst_14 = arith.constant 1.000000e+00 : f32
    %25 = vector.broadcast %cst_14 : f32 to vector<8x1xf32>
    %26 = arith.divf %25, %24 : vector<8x1xf32>
    %27 = vector.broadcast %26 : vector<8x1xf32> to vector<8x8xf32>
    %28 = arith.mulf %22, %27 : vector<8x8xf32>
    %29 = arith.truncf %28 : vector<8x8xf32> to vector<8x8xbf16>
    %cst_15 = arith.constant dense<0.000000e+00> : vector<8x8xf32>
    %30 = tpu.matmul %29, %16, %cst_15 {dimension_numbers = #tpu.dot_dimension_numbers<[1], [0], [0], [1], [0, 0, 1, 1], [], []>} : vector<8x8xbf16>, vector<8x8xbf16>, vector<8x8xf32> -> vector<8x8xf32>
    %31 = arith.truncf %30 : vector<8x8xf32> to vector<8x8xbf16>
    %c0_16 = arith.constant 0 : index
    %c0_17 = arith.constant 0 : index
    %32 = vector.load %arg16[%c0_16, %c0_17] : memref<8x32xbf16, #tpu.memory_space<vmem>>, vector<8x8xbf16>
    tpu.vector_store %arg16[%c0_16, %c0_17], %31 {strides = array<i32>} : memref<8x32xbf16, #tpu.memory_space<vmem>>, vector<8x8xbf16>,
    %33 = vector.extract_strided_slice %10 {offsets = [0, 8], sizes = [8, 8], strides = [1, 1]} : vector<8x32xf32> to vector<8x8xf32>
    %34 = arith.truncf %33 : vector<8x8xf32> to vector<8x8xbf16>
    %35 = vector.extract_strided_slice %11 {offsets = [0, 8], sizes = [8, 8], strides = [1, 1]} : vector<8x32xbf16> to vector<8x8xbf16>
    %36 = vector.extract_strided_slice %12 {offsets = [0, 8], sizes = [8, 8], strides = [1, 1]} : vector<8x32xbf16> to vector<8x8xbf16>
    %cst_18 = arith.constant dense<0.000000e+00> : vector<8x8xf32>
    %37 = tpu.matmul %34, %35, %cst_18 {dimension_numbers = #tpu.dot_dimension_numbers<[1], [1], [0], [0], [0, 0, 1, 0], [], []>} : vector<8x8xbf16>, vector<8x8xbf16>, vector<8x8xf32> -> vector<8x8xf32>
    %cst_19 = arith.constant dense<0xFF800000> : vector<8xf32>
    %38 = vector.multi_reduction <maximumf>, %37, %cst_19 [1] : vector<8x8xf32> to vector<8xf32>
    %39 = vector.shape_cast %38 : vector<8xf32> to vector<8x1xf32>
    %40 = vector.broadcast %39 : vector<8x1xf32> to vector<8x8xf32>
    %41 = arith.subf %37, %40 : vector<8x8xf32>
    %42 = math.exp %41 : vector<8x8xf32>
    %cst_20 = arith.constant dense<0.000000e+00> : vector<8xf32>
    %43 = vector.multi_reduction <add>, %42, %cst_20 [1] : vector<8x8xf32> to vector<8xf32>
    %44 = vector.shape_cast %43 : vector<8xf32> to vector<8x1xf32>
    %cst_21 = arith.constant 1.000000e+00 : f32
    %45 = vector.broadcast %cst_21 : f32 to vector<8x1xf32>
    %46 = arith.divf %45, %44 : vector<8x1xf32>
    %47 = vector.broadcast %46 : vector<8x1xf32> to vector<8x8xf32>
    %48 = arith.mulf %42, %47 : vector<8x8xf32>
    %49 = arith.truncf %48 : vector<8x8xf32> to vector<8x8xbf16>
    %cst_22 = arith.constant dense<0.000000e+00> : vector<8x8xf32>
    %50 = tpu.matmul %49, %36, %cst_22 {dimension_numbers = #tpu.dot_dimension_numbers<[1], [0], [0], [1], [0, 0, 1, 1], [], []>} : vector<8x8xbf16>, vector<8x8xbf16>, vector<8x8xf32> -> vector<8x8xf32>
    %51 = arith.truncf %50 : vector<8x8xf32> to vector<8x8xbf16>
    %c0_23 = arith.constant 0 : index
    %c8 = arith.constant 8 : index
    %52 = vector.load %arg16[%c0_23, %c8] : memref<8x32xbf16, #tpu.memory_space<vmem>>, vector<8x8xbf16>
    tpu.vector_store %arg16[%c0_23, %c8], %51 {strides = array<i32>} : memref<8x32xbf16, #tpu.memory_space<vmem>>, vector<8x8xbf16>,
    %53 = vector.extract_strided_slice %10 {offsets = [0, 16], sizes = [8, 8], strides = [1, 1]} : vector<8x32xf32> to vector<8x8xf32>
    %54 = arith.truncf %53 : vector<8x8xf32> to vector<8x8xbf16>
    %55 = vector.extract_strided_slice %11 {offsets = [0, 16], sizes = [8, 8], strides = [1, 1]} : vector<8x32xbf16> to vector<8x8xbf16>
    %56 = vector.extract_strided_slice %12 {offsets = [0, 16], sizes = [8, 8], strides = [1, 1]} : vector<8x32xbf16> to vector<8x8xbf16>
    %cst_24 = arith.constant dense<0.000000e+00> : vector<8x8xf32>
    %57 = tpu.matmul %54, %55, %cst_24 {dimension_numbers = #tpu.dot_dimension_numbers<[1], [1], [0], [0], [0, 0, 1, 0], [], []>} : vector<8x8xbf16>, vector<8x8xbf16>, vector<8x8xf32> -> vector<8x8xf32>
    %cst_25 = arith.constant dense<0xFF800000> : vector<8xf32>
    %58 = vector.multi_reduction <maximumf>, %57, %cst_25 [1] : vector<8x8xf32> to vector<8xf32>
    %59 = vector.shape_cast %58 : vector<8xf32> to vector<8x1xf32>
    %60 = vector.broadcast %59 : vector<8x1xf32> to vector<8x8xf32>
    %61 = arith.subf %57, %60 : vector<8x8xf32>
    %62 = math.exp %61 : vector<8x8xf32>
    %cst_26 = arith.constant dense<0.000000e+00> : vector<8xf32>
    %63 = vector.multi_reduction <add>, %62, %cst_26 [1] : vector<8x8xf32> to vector<8xf32>
    %64 = vector.shape_cast %63 : vector<8xf32> to vector<8x1xf32>
    %cst_27 = arith.constant 1.000000e+00 : f32
    %65 = vector.broadcast %cst_27 : f32 to vector<8x1xf32>
    %66 = arith.divf %65, %64 : vector<8x1xf32>
    %67 = vector.broadcast %66 : vector<8x1xf32> to vector<8x8xf32>
    %68 = arith.mulf %62, %67 : vector<8x8xf32>
    %69 = arith.truncf %68 : vector<8x8xf32> to vector<8x8xbf16>
    %cst_28 = arith.constant dense<0.000000e+00> : vector<8x8xf32>
    %70 = tpu.matmul %69, %56, %cst_28 {dimension_numbers = #tpu.dot_dimension_numbers<[1], [0], [0], [1], [0, 0, 1, 1], [], []>} : vector<8x8xbf16>, vector<8x8xbf16>, vector<8x8xf32> -> vector<8x8xf32>
    %71 = arith.truncf %70 : vector<8x8xf32> to vector<8x8xbf16>
    %c0_29 = arith.constant 0 : index
    %c16 = arith.constant 16 : index
    %72 = vector.load %arg16[%c0_29, %c16] : memref<8x32xbf16, #tpu.memory_space<vmem>>, vector<8x8xbf16>
    tpu.vector_store %arg16[%c0_29, %c16], %71 {strides = array<i32>} : memref<8x32xbf16, #tpu.memory_space<vmem>>, vector<8x8xbf16>,
    %73 = vector.extract_strided_slice %10 {offsets = [0, 24], sizes = [8, 8], strides = [1, 1]} : vector<8x32xf32> to vector<8x8xf32>
    %74 = arith.truncf %73 : vector<8x8xf32> to vector<8x8xbf16>
    %75 = vector.extract_strided_slice %11 {offsets = [0, 24], sizes = [8, 8], strides = [1, 1]} : vector<8x32xbf16> to vector<8x8xbf16>
    %76 = vector.extract_strided_slice %12 {offsets = [0, 24], sizes = [8, 8], strides = [1, 1]} : vector<8x32xbf16> to vector<8x8xbf16>
    %cst_30 = arith.constant dense<0.000000e+00> : vector<8x8xf32>
    %77 = tpu.matmul %74, %75, %cst_30 {dimension_numbers = #tpu.dot_dimension_numbers<[1], [1], [0], [0], [0, 0, 1, 0], [], []>} : vector<8x8xbf16>, vector<8x8xbf16>, vector<8x8xf32> -> vector<8x8xf32>
    %cst_31 = arith.constant dense<0xFF800000> : vector<8xf32>
    %78 = vector.multi_reduction <maximumf>, %77, %cst_31 [1] : vector<8x8xf32> to vector<8xf32>
    %79 = vector.shape_cast %78 : vector<8xf32> to vector<8x1xf32>
    %80 = vector.broadcast %79 : vector<8x1xf32> to vector<8x8xf32>
    %81 = arith.subf %77, %80 : vector<8x8xf32>
    %82 = math.exp %81 : vector<8x8xf32>
    %cst_32 = arith.constant dense<0.000000e+00> : vector<8xf32>
    %83 = vector.multi_reduction <add>, %82, %cst_32 [1] : vector<8x8xf32> to vector<8xf32>
    %84 = vector.shape_cast %83 : vector<8xf32> to vector<8x1xf32>
    %cst_33 = arith.constant 1.000000e+00 : f32
    %85 = vector.broadcast %cst_33 : f32 to vector<8x1xf32>
    %86 = arith.divf %85, %84 : vector<8x1xf32>
    %87 = vector.broadcast %86 : vector<8x1xf32> to vector<8x8xf32>
    %88 = arith.mulf %82, %87 : vector<8x8xf32>
    %89 = arith.truncf %88 : vector<8x8xf32> to vector<8x8xbf16>
    %cst_34 = arith.constant dense<0.000000e+00> : vector<8x8xf32>
    %90 = tpu.matmul %89, %76, %cst_34 {dimension_numbers = #tpu.dot_dimension_numbers<[1], [0], [0], [1], [0, 0, 1, 1], [], []>} : vector<8x8xbf16>, vector<8x8xbf16>, vector<8x8xf32> -> vector<8x8xf32>
    %91 = arith.truncf %90 : vector<8x8xf32> to vector<8x8xbf16>
    %c0_35 = arith.constant 0 : index
    %c24 = arith.constant 24 : index
    %92 = vector.load %arg16[%c0_35, %c24] : memref<8x32xbf16, #tpu.memory_space<vmem>>, vector<8x8xbf16>
    tpu.vector_store %arg16[%c0_35, %c24], %91 {strides = array<i32>} : memref<8x32xbf16, #tpu.memory_space<vmem>>, vector<8x8xbf16>,
    %c0_36 = arith.constant 0 : index
    %c0_37 = arith.constant 0 : index
    %93 = vector.load %arg16[%c0_36, %c0_37] : memref<8x32xbf16, #tpu.memory_space<vmem>>, vector<8x32xbf16>
    %c0_38 = arith.constant 0 : index
    %c0_39 = arith.constant 0 : index
    %94 = vector.load %arg11[%c0_38, %c0_39] : memref<32x32xbf16, #tpu.memory_space<vmem>>, vector<32x32xbf16>
    %cst_40 = arith.constant dense<0.000000e+00> : vector<8x32xf32>
    %95 = tpu.matmul %93, %94, %cst_40 {dimension_numbers = #tpu.dot_dimension_numbers<[1], [0], [0], [1], [0, 0, 1, 1], [], []>} : vector<8x32xbf16>, vector<32x32xbf16>, vector<8x32xf32> -> vector<8x32xf32>
    %c0_41 = arith.constant 0 : index
    %c0_42 = arith.constant 0 : index
    %96 = vector.load %arg12[%c0_41, %c0_42] : memref<1x32xf32, #tpu.memory_space<vmem>>, vector<1x32xf32>
    %97 = vector.broadcast %96 : vector<1x32xf32> to vector<8x32xf32>
    %98 = arith.addf %95, %97 : vector<8x32xf32>
    %c0_43 = arith.constant 0 : index
    %c0_44 = arith.constant 0 : index
    %c0_45 = arith.constant 0 : index
    %99 = vector.load %arg13[%c0_43, %c0_44, %c0_45] : memref<1x8x32xf32, #tpu.memory_space<vmem>>, vector<1x8x32xf32>
    %100 = vector.shape_cast %99 : vector<1x8x32xf32> to vector<8x32xf32>
    %101 = vector.shape_cast %98 : vector<8x32xf32> to vector<1x8x32xf32>
    tpu.vector_store %arg13[%c0_43, %c0_44, %c0_45], %101 {strides = array<i32>} : memref<1x8x32xf32, #tpu.memory_space<vmem>>, vector<1x8x32xf32>,
    return
  }
  func.func @transform_0(%arg0: i32, %arg1: i32) -> (i32, i32, i32) {
    %c0_i32 = arith.constant 0 : i32
    %c0_i32_0 = arith.constant 0 : i32
    return %arg0, %arg1, %c0_i32 : i32, i32, i32
  }
  func.func @transform_1(%arg0: i32, %arg1: i32) -> (i32, i32, i32) {
    %c0_i32 = arith.constant 0 : i32
    %c0_i32_0 = arith.constant 0 : i32
    %c0_i32_1 = arith.constant 0 : i32
    return %arg0, %c0_i32, %c0_i32_0 : i32, i32, i32
  }
  func.func @transform_2(%arg0: i32, %arg1: i32) -> (i32, i32, i32) {
    %c0_i32 = arith.constant 0 : i32
    %c0_i32_0 = arith.constant 0 : i32
    %c0_i32_1 = arith.constant 0 : i32
    return %arg0, %c0_i32, %c0_i32_0 : i32, i32, i32
  }
  func.func @transform_3(%arg0: i32, %arg1: i32) -> (i32, i32) {
    %c0_i32 = arith.constant 0 : i32
    %c0_i32_0 = arith.constant 0 : i32
    %c0_i32_1 = arith.constant 0 : i32
    return %c0_i32, %c0_i32_0 : i32, i32
  }
  func.func @transform_4(%arg0: i32, %arg1: i32) -> (i32, i32) {
    %c0_i32 = arith.constant 0 : i32
    %c0_i32_0 = arith.constant 0 : i32
    %c0_i32_1 = arith.constant 0 : i32
    return %c0_i32, %c0_i32_0 : i32, i32
  }
  func.func @transform_5(%arg0: i32, %arg1: i32) -> (i32, i32) {
    %c0_i32 = arith.constant 0 : i32
    %c0_i32_0 = arith.constant 0 : i32
    %c0_i32_1 = arith.constant 0 : i32
    return %c0_i32, %c0_i32_0 : i32, i32
  }
  func.func @transform_6(%arg0: i32, %arg1: i32) -> (i32, i32) {
    %c0_i32 = arith.constant 0 : i32
    %c0_i32_0 = arith.constant 0 : i32
    %c0_i32_1 = arith.constant 0 : i32
    return %c0_i32, %c0_i32_0 : i32, i32
  }
  func.func @transform_7(%arg0: i32, %arg1: i32) -> (i32, i32) {
    %c0_i32 = arith.constant 0 : i32
    %c0_i32_0 = arith.constant 0 : i32
    %c0_i32_1 = arith.constant 0 : i32
    return %c0_i32, %c0_i32_0 : i32, i32
  }
  func.func @transform_8(%arg0: i32, %arg1: i32) -> (i32, i32) {
    %c0_i32 = arith.constant 0 : i32
    %c0_i32_0 = arith.constant 0 : i32
    %c0_i32_1 = arith.constant 0 : i32
    return %c0_i32, %c0_i32_0 : i32, i32
  }
  func.func @transform_9(%arg0: i32, %arg1: i32) -> (i32, i32) {
    %c0_i32 = arith.constant 0 : i32
    %c0_i32_0 = arith.constant 0 : i32
    %c0_i32_1 = arith.constant 0 : i32
    return %c0_i32, %c0_i32_0 : i32, i32
  }
  func.func @transform_10(%arg0: i32, %arg1: i32) -> (i32, i32) {
    %c0_i32 = arith.constant 0 : i32
    %c0_i32_0 = arith.constant 0 : i32
    %c0_i32_1 = arith.constant 0 : i32
    return %c0_i32, %c0_i32_0 : i32, i32
  }
  func.func @transform_11(%arg0: i32, %arg1: i32) -> (i32, i32, i32) {
    %c0_i32 = arith.constant 0 : i32
    %c0_i32_0 = arith.constant 0 : i32
    return %arg0, %arg1, %c0_i32 : i32, i32, i32
  }
}

</mosaic_0001>

<llo_original>
// kernel: tpu_custom_call.1
$region0: #{tpu_custom_call.1}
  #allocation0 [shape = 'u32[]', space=smem, size = 0x4, offset = 0x4, fixed_abs, tag = 'smem constant byte address 0x4 - core index']
  #allocation1 [shape = 'u32[72,128]{1,0:T(1,128)}', space=vmem, size = 0x9000, scoped, tag = 'internal scratch']
  #allocation2 [shape = 'bf16[8,32]{1,0:T(8,128)(2,1)}', space=vmem, size = 0x800, scoped, tag = 'scratch operand']
  #allocation3 [shape = 'bf16[8,32]{1,0:T(8,128)(2,1)}', space=vmem, size = 0x800, scoped, tag = 'scratch operand']
  #allocation4 [shape = 'bf16[8,32]{1,0:T(8,128)(2,1)}', space=vmem, size = 0x800, scoped, tag = 'scratch operand']
  %s0 = inlined_call_operand.hbm [shape: f32[2,8,32], index: 0, kind: input, shape index: {}]
  %s1 = inlined_call_operand.hbm [shape: f32[2,8,32], index: 1, kind: input, shape index: {}]
  %s2 = inlined_call_operand.hbm [shape: f32[2,8,32], index: 2, kind: input, shape index: {}]
  %s3 = inlined_call_operand.hbm [shape: bf16[32,32], index: 3, kind: input, shape index: {}]
  %s4 = inlined_call_operand.vmem [shape: f32[1,32], index: 4, kind: input, shape index: {}]
  %s5 = inlined_call_operand.hbm [shape: bf16[32,32], index: 5, kind: input, shape index: {}]
  %s6 = inlined_call_operand.vmem [shape: f32[1,32], index: 6, kind: input, shape index: {}]
  %s7 = inlined_call_operand.hbm [shape: bf16[32,32], index: 7, kind: input, shape index: {}]
  %s8 = inlined_call_operand.vmem [shape: f32[1,32], index: 8, kind: input, shape index: {}]
  %s9 = inlined_call_operand.hbm [shape: bf16[32,32], index: 9, kind: input, shape index: {}]
  %s10 = inlined_call_operand.vmem [shape: f32[1,32], index: 10, kind: input, shape index: {}]
  %s11 = inlined_call_operand.hbm [shape: f32[2,8,32], index: 11, kind: output, shape index: {}]
  %s12 = sld [smem:[#allocation0]]
  $region109: #{tpu_custom_call.1} parent=0
    _
  %s14 = ssub.s32 1, %s12
  %s15 = scalar_select 0, %s14, %s12
  $region1: #{tpu_custom_call.1} parent=0
    #allocation5 [shape = 'u8[8192]{0}', space=vmem, size = 0x2000, scoped, tag = 'input window, operand 0']
    #allocation6 [shape = 's32[2]{0}', space=sflag, size = 0x8, scoped, tag = 'scoped memory for tpu_custom_call.1']
    #allocation7 [shape = 's32[2]{0}', space=sflag, size = 0x8, scoped, tag = 'scoped memory for tpu_custom_call.1']
    #allocation8 [shape = 'u8[8192]{0}', space=vmem, size = 0x2000, scoped, tag = 'input window, operand 1']
    #allocation9 [shape = 's32[2]{0}', space=sflag, size = 0x8, scoped, tag = 'scoped memory for tpu_custom_call.1']
    #allocation10 [shape = 'u8[8192]{0}', space=vmem, size = 0x2000, scoped, tag = 'input window, operand 2']
    #allocation11 [shape = 'u8[8192]{0}', space=vmem, size = 0x2000, scoped, tag = 'input window, operand 3, single buffered']
    #allocation12 [shape = 's32[1]{0}', space=sflag, size = 0x4, scoped, tag = 'scoped memory for tpu_custom_call.1']
    #allocation13 [shape = 'u8[8192]{0}', space=vmem, size = 0x2000, scoped, tag = 'input window, operand 5, single buffered']
    #allocation14 [shape = 'u8[8192]{0}', space=vmem, size = 0x2000, scoped, tag = 'input window, operand 7, single buffered']
    #allocation15 [shape = 's32[1]{0}', space=sflag, size = 0x4, scoped, tag = 'scoped memory for tpu_custom_call.1']
    #allocation16 [shape = 'u8[8192]{0}', space=vmem, size = 0x2000, scoped, tag = 'input window, operand 9, single buffered']
    #allocation17 [shape = 'u8[8192]{0}', space=vmem, size = 0x2000, scoped, tag = 'output window, operand 0']
    %16 = vsyncpa [#allocation6], 0
    %s17 = scalar_lea.sflag [#allocation6], 1
    %18 = vsyncpa %s17, 0
    %19 = vsyncpa [#allocation9], 0
    %s20 = scalar_lea.sflag [#allocation9], 1
    %21 = vsyncpa %s20, 0
    %22 = vsyncpa [#allocation12], 0
    %23 = vsyncpa [#allocation15], 0
    %24 = vsyncpa [#allocation7], 0
    %s25 = scalar_lea.sflag [#allocation7], 1
    %26 = vsyncpa %s25, 0
    loop: start=0, step=1, limit=4
    $region2: #{tpu_custom_call.1} parent=1 // loop_pre_header
      _
    $region3: #{tpu_custom_call.1} parent=1 // loop_header
      %s28 = sphi 0, %s32
      %p29 = scmp.ge.s32.totalorder %s28, 4
      %s35 = sphi 0, %s47
      %s36 = sphi 0, %s43
      %s37 = sphi 0, %s35
      %s38 = sphi 0, %s36
      %s39 = sphi 0, %s37
      %s40 = sphi 0, %s38
      %s52 = sphi 0, %s54
      %s55 = sphi 0, %s52
      %s56 = sphi 0, %s55
      %s72 = sphi 0, %s56
      %s78 = sphi 0, %s80
      %s81 = sphi 0, %s78
      %s82 = sphi 0, %s81
      %s98 = sphi 0, %s82
      %s104 = sphi 0, %s106
      %s107 = sphi 0, %s104
      %s108 = sphi 0, %s107
      %s124 = sphi 0, %s108
      %s128 = sphi 0, %s128
      %s130 = sphi 0, %s128
      %s131 = sphi 0, %s130
      %s145 = sphi 0, %s131
      %s149 = sphi 0, %s149
      %s151 = sphi 0, %s149
      %s152 = sphi 0, %s151
      %s166 = sphi 0, %s152
      %s170 = sphi 0, %s170
      %s172 = sphi 0, %s170
      %s173 = sphi 0, %s172
      %s187 = sphi 0, %s173
      %s191 = sphi 0, %s191
      %s193 = sphi 0, %s191
      %s194 = sphi 0, %s193
      %s208 = sphi 0, %s194
      %s212 = sphi 0, %s212
      %s214 = sphi 0, %s212
      %s215 = sphi 0, %s214
      %s229 = sphi 0, %s215
      %s233 = sphi 0, %s233
      %s235 = sphi 0, %s233
      %s236 = sphi 0, %s235
      %s250 = sphi 0, %s236
      %s254 = sphi 0, %s254
      %s256 = sphi 0, %s254
      %s257 = sphi 0, %s256
      %s271 = sphi 0, %s257
      %s275 = sphi 0, %s275
      %s277 = sphi 0, %s275
      %s278 = sphi 0, %s277
      %s292 = sphi 0, %s278
      %s300 = sphi 0, %s302
      %s303 = sphi 0, %s300
      %s304 = sphi 0, %s303
      %s320 = sphi 0, %s304
    $region4: #{tpu_custom_call.1} parent=1 // loop_header_branch
      %31 = sbr.rel (%p29) target = $region8
    $region5: #{tpu_custom_call.1} parent=1 // loop_body
      %s33 = ssub.s32 %s28, 1
      %s34 = ssub.s32 %s28, 2
      %s41 = sadd.s32 1, %s36
      %p42 = scmp.ge.s32.totalorder %s41, 1
      %s43 = scalar_select %p42, 0, %s41
      %s44 = sadd.s32 1, %s35
      %s45 = scalar_select %p42, %s44, %s35
      %p46 = scmp.ge.s32.totalorder %s45, 2
      %s47 = scalar_select %p46, 0, %s45
      %s48 = ssub.s32 %s35, %s47
      %s49 = ssub.s32 %s36, %s43
      %s50 = sor.u32 %s48, %s49
      %p51 = scmp.eq.s32.totalorder %s50, 0
      %s53 = sadd.s32 %s52, 1
      %s54 = scalar_select %p51, %s52, %s53
      %p57 = pneg %p51
      %p58 = scmp.eq.s32.totalorder %s28, 1
      %p59 = por %p57, %p58
      %p60 = scmp.ne.s32.totalorder %s52, %s55
      %p61 = scmp.eq.s32.totalorder %s28, 0
      %p62 = por %p60, %p61
      %p63 = scmp.ne.s32.totalorder %s52, %s55
      %p64 = scmp.eq.s32.totalorder %s33, 1
      %p65 = por %p63, %p64
      %p66 = scmp.ne.s32.totalorder %s55, %s56
      %p67 = scmp.eq.s32.totalorder %s33, 0
      %p68 = por %p66, %p67
      %p69 = scmp.ne.s32.totalorder %s55, %s56
      %p70 = scmp.eq.s32.totalorder %s34, 1
      %p71 = por %p69, %p70
      %p73 = scmp.ne.s32.totalorder %s56, %s72
      %p74 = scmp.eq.s32.totalorder %s34, 0
      %p75 = por %p73, %p74
      %s76 = ssub.s32 %s35, %s47
      %p77 = scmp.eq.s32.totalorder %s76, 0
      %s79 = sadd.s32 %s78, 1
      %s80 = scalar_select %p77, %s78, %s79
      %p83 = pneg %p77
      %p84 = scmp.eq.s32.totalorder %s28, 1
      %p85 = por %p83, %p84
      %p86 = scmp.ne.s32.totalorder %s78, %s81
      %p87 = scmp.eq.s32.totalorder %s28, 0
      %p88 = por %p86, %p87
      %p89 = scmp.ne.s32.totalorder %s78, %s81
      %p90 = scmp.eq.s32.totalorder %s33, 1
      %p91 = por %p89, %p90
      %p92 = scmp.ne.s32.totalorder %s81, %s82
      %p93 = scmp.eq.s32.totalorder %s33, 0
      %p94 = por %p92, %p93
      %p95 = scmp.ne.s32.totalorder %s81, %s82
      %p96 = scmp.eq.s32.totalorder %s34, 1
      %p97 = por %p95, %p96
      %p99 = scmp.ne.s32.totalorder %s82, %s98
      %p100 = scmp.eq.s32.totalorder %s34, 0
      %p101 = por %p99, %p100
      %s102 = ssub.s32 %s35, %s47
      %p103 = scmp.eq.s32.totalorder %s102, 0
      %s105 = sadd.s32 %s104, 1
      %s106 = scalar_select %p103, %s104, %s105
      %p109 = pneg %p103
      %p110 = scmp.eq.s32.totalorder %s28, 1
      %p111 = por %p109, %p110
      %p112 = scmp.ne.s32.totalorder %s104, %s107
      %p113 = scmp.eq.s32.totalorder %s28, 0
      %p114 = por %p112, %p113
      %p115 = scmp.ne.s32.totalorder %s104, %s107
      %p116 = scmp.eq.s32.totalorder %s33, 1
      %p117 = por %p115, %p116
      %p118 = scmp.ne.s32.totalorder %s107, %s108
      %p119 = scmp.eq.s32.totalorder %s33, 0
      %p120 = por %p118, %p119
      %p121 = scmp.ne.s32.totalorder %s107, %s108
      %p122 = scmp.eq.s32.totalorder %s34, 1
      %p123 = por %p121, %p122
      %p125 = scmp.ne.s32.totalorder %s108, %s124
      %p126 = scmp.eq.s32.totalorder %s34, 0
      %p127 = por %p125, %p126
      %s129 = sadd.s32 %s128, 1
      %p132 = scmp.eq.s32.totalorder %s28, 1
      %p133 = scmp.ne.s32.totalorder %s128, %s130
      %p134 = scmp.eq.s32.totalorder %s28, 0
      %p135 = por %p133, %p134
      %p136 = scmp.ne.s32.totalorder %s128, %s130
      %p137 = scmp.eq.s32.totalorder %s33, 1
      %p138 = por %p136, %p137
      %p139 = scmp.ne.s32.totalorder %s130, %s131
      %p140 = scmp.eq.s32.totalorder %s33, 0
      %p141 = por %p139, %p140
      %p142 = scmp.ne.s32.totalorder %s130, %s131
      %p143 = scmp.eq.s32.totalorder %s34, 1
      %p144 = por %p142, %p143
      %p146 = scmp.ne.s32.totalorder %s131, %s145
      %p147 = scmp.eq.s32.totalorder %s34, 0
      %p148 = por %p146, %p147
      %s150 = sadd.s32 %s149, 1
      %p153 = scmp.eq.s32.totalorder %s28, 1
      %p154 = scmp.ne.s32.totalorder %s149, %s151
      %p155 = scmp.eq.s32.totalorder %s28, 0
      %p156 = por %p154, %p155
      %p157 = scmp.ne.s32.totalorder %s149, %s151
      %p158 = scmp.eq.s32.totalorder %s33, 1
      %p159 = por %p157, %p158
      %p160 = scmp.ne.s32.totalorder %s151, %s152
      %p161 = scmp.eq.s32.totalorder %s33, 0
      %p162 = por %p160, %p161
      %p163 = scmp.ne.s32.totalorder %s151, %s152
      %p164 = scmp.eq.s32.totalorder %s34, 1
      %p165 = por %p163, %p164
      %p167 = scmp.ne.s32.totalorder %s152, %s166
      %p168 = scmp.eq.s32.totalorder %s34, 0
      %p169 = por %p167, %p168
      %s171 = sadd.s32 %s170, 1
      %p174 = scmp.eq.s32.totalorder %s28, 1
      %p175 = scmp.ne.s32.totalorder %s170, %s172
      %p176 = scmp.eq.s32.totalorder %s28, 0
      %p177 = por %p175, %p176
      %p178 = scmp.ne.s32.totalorder %s170, %s172
      %p179 = scmp.eq.s32.totalorder %s33, 1
      %p180 = por %p178, %p179
      %p181 = scmp.ne.s32.totalorder %s172, %s173
      %p182 = scmp.eq.s32.totalorder %s33, 0
      %p183 = por %p181, %p182
      %p184 = scmp.ne.s32.totalorder %s172, %s173
      %p185 = scmp.eq.s32.totalorder %s34, 1
      %p186 = por %p184, %p185
      %p188 = scmp.ne.s32.totalorder %s173, %s187
      %p189 = scmp.eq.s32.totalorder %s34, 0
      %p190 = por %p188, %p189
      %s192 = sadd.s32 %s191, 1
      %p195 = scmp.eq.s32.totalorder %s28, 1
      %p196 = scmp.ne.s32.totalorder %s191, %s193
      %p197 = scmp.eq.s32.totalorder %s28, 0
      %p198 = por %p196, %p197
      %p199 = scmp.ne.s32.totalorder %s191, %s193
      %p200 = scmp.eq.s32.totalorder %s33, 1
      %p201 = por %p199, %p200
      %p202 = scmp.ne.s32.totalorder %s193, %s194
      %p203 = scmp.eq.s32.totalorder %s33, 0
      %p204 = por %p202, %p203
      %p205 = scmp.ne.s32.totalorder %s193, %s194
      %p206 = scmp.eq.s32.totalorder %s34, 1
      %p207 = por %p205, %p206
      %p209 = scmp.ne.s32.totalorder %s194, %s208
      %p210 = scmp.eq.s32.totalorder %s34, 0
      %p211 = por %p209, %p210
      %s213 = sadd.s32 %s212, 1
      %p216 = scmp.eq.s32.totalorder %s28, 1
      %p217 = scmp.ne.s32.totalorder %s212, %s214
      %p218 = scmp.eq.s32.totalorder %s28, 0
      %p219 = por %p217, %p218
      %p220 = scmp.ne.s32.totalorder %s212, %s214
      %p221 = scmp.eq.s32.totalorder %s33, 1
      %p222 = por %p220, %p221
      %p223 = scmp.ne.s32.totalorder %s214, %s215
      %p224 = scmp.eq.s32.totalorder %s33, 0
      %p225 = por %p223, %p224
      %p226 = scmp.ne.s32.totalorder %s214, %s215
      %p227 = scmp.eq.s32.totalorder %s34, 1
      %p228 = por %p226, %p227
      %p230 = scmp.ne.s32.totalorder %s215, %s229
      %p231 = scmp.eq.s32.totalorder %s34, 0
      %p232 = por %p230, %p231
      %s234 = sadd.s32 %s233, 1
      %p237 = scmp.eq.s32.totalorder %s28, 1
      %p238 = scmp.ne.s32.totalorder %s233, %s235
      %p239 = scmp.eq.s32.totalorder %s28, 0
      %p240 = por %p238, %p239
      %p241 = scmp.ne.s32.totalorder %s233, %s235
      %p242 = scmp.eq.s32.totalorder %s33, 1
      %p243 = por %p241, %p242
      %p244 = scmp.ne.s32.totalorder %s235, %s236
      %p245 = scmp.eq.s32.totalorder %s33, 0
      %p246 = por %p244, %p245
      %p247 = scmp.ne.s32.totalorder %s235, %s236
      %p248 = scmp.eq.s32.totalorder %s34, 1
      %p249 = por %p247, %p248
      %p251 = scmp.ne.s32.totalorder %s236, %s250
      %p252 = scmp.eq.s32.totalorder %s34, 0
      %p253 = por %p251, %p252
      %s255 = sadd.s32 %s254, 1
      %p258 = scmp.eq.s32.totalorder %s28, 1
      %p259 = scmp.ne.s32.totalorder %s254, %s256
      %p260 = scmp.eq.s32.totalorder %s28, 0
      %p261 = por %p259, %p260
      %p262 = scmp.ne.s32.totalorder %s254, %s256
      %p263 = scmp.eq.s32.totalorder %s33, 1
      %p264 = por %p262, %p263
      %p265 = scmp.ne.s32.totalorder %s256, %s257
      %p266 = scmp.eq.s32.totalorder %s33, 0
      %p267 = por %p265, %p266
      %p268 = scmp.ne.s32.totalorder %s256, %s257
      %p269 = scmp.eq.s32.totalorder %s34, 1
      %p270 = por %p268, %p269
      %p272 = scmp.ne.s32.totalorder %s257, %s271
      %p273 = scmp.eq.s32.totalorder %s34, 0
      %p274 = por %p272, %p273
      %s276 = sadd.s32 %s275, 1
      %p279 = scmp.eq.s32.totalorder %s28, 1
      %p280 = scmp.ne.s32.totalorder %s275, %s277
      %p281 = scmp.eq.s32.totalorder %s28, 0
      %p282 = por %p280, %p281
      %p283 = scmp.ne.s32.totalorder %s275, %s277
      %p284 = scmp.eq.s32.totalorder %s33, 1
      %p285 = por %p283, %p284
      %p286 = scmp.ne.s32.totalorder %s277, %s278
      %p287 = scmp.eq.s32.totalorder %s33, 0
      %p288 = por %p286, %p287
      %p289 = scmp.ne.s32.totalorder %s277, %s278
      %p290 = scmp.eq.s32.totalorder %s34, 1
      %p291 = por %p289, %p290
      %p293 = scmp.ne.s32.totalorder %s278, %s292
      %p294 = scmp.eq.s32.totalorder %s34, 0
      %p295 = por %p293, %p294
      %s296 = ssub.s32 %s35, %s47
      %s297 = ssub.s32 %s36, %s43
      %s298 = sor.u32 %s296, %s297
      %p299 = scmp.eq.s32.totalorder %s298, 0
      %s301 = sadd.s32 %s300, 1
      %s302 = scalar_select %p299, %s300, %s301
      %p305 = pneg %p299
      %p306 = scmp.eq.s32.totalorder %s28, 1
      %p307 = por %p305, %p306
      %p308 = scmp.ne.s32.totalorder %s300, %s303
      %p309 = scmp.eq.s32.totalorder %s28, 0
      %p310 = por %p308, %p309
      %p311 = scmp.ne.s32.totalorder %s300, %s303
      %p312 = scmp.eq.s32.totalorder %s33, 1
      %p313 = por %p311, %p312
      %p314 = scmp.ne.s32.totalorder %s303, %s304
      %p315 = scmp.eq.s32.totalorder %s33, 0
      %p316 = por %p314, %p315
      %p317 = scmp.ne.s32.totalorder %s303, %s304
      %p318 = scmp.eq.s32.totalorder %s34, 1
      %p319 = por %p317, %p318
      %p321 = scmp.ne.s32.totalorder %s304, %s320
      %p322 = scmp.eq.s32.totalorder %s34, 0
      %p323 = por %p321, %p322
      %p324 = scmp.le.s32.totalorder 1, %s28
      %p325 = scmp.lt.s32.totalorder %s28, 3
      %p326 = pnand %p324, %p325
      %p327 = pneg %p326
      // Predicated region
      $region9: #{tpu_custom_call.1} parent=5 // pred_check
        _
      $region10: #{tpu_custom_call.1} parent=5 // pred_check_branch
        %329 = sbr.rel (%p326) target = $region12
      $region11: #{tpu_custom_call.1} parent=5 // pred_region
        %s330 = ssub.s32 %s28, 1
        // Predicated region
        $region13: #{tpu_custom_call.1} parent=11 // pred_check
          %p331 = pneg %p141
        $region14: #{tpu_custom_call.1} parent=11 // pred_check_branch
          %333 = sbr.rel (%p331) target = $region16
        $region15: #{tpu_custom_call.1} parent=11 // pred_region
          %335 = vsyncadd [#allocation12], 0
          %s336 = sshll.u32 %s3, 4
          %s337 = int_to_ptr.hbm [resolvable:$true] %s336
          %s338 = sshll.u32 [#allocation11], 4
          %s339 = int_to_ptr.vmem [resolvable:$true] %s338
          %344 = dma.hbm_to_vmem [thread:$0]  %s337, 256, %s339, [#allocation12], 64, 64, 4
        $region16: #{tpu_custom_call.1} parent=11 // pred_fallthru
          _
        // Predicated region
        $region17: #{tpu_custom_call.1} parent=11 // pred_check
          %p345 = pneg %p162
        $region18: #{tpu_custom_call.1} parent=11 // pred_check_branch
          %347 = sbr.rel (%p345) target = $region20
        $region19: #{tpu_custom_call.1} parent=11 // pred_region
          _
        $region20: #{tpu_custom_call.1} parent=11 // pred_fallthru
          _
        // Predicated region
        $region21: #{tpu_custom_call.1} parent=11 // pred_check
          %p348 = pneg %p183
        $region22: #{tpu_custom_call.1} parent=11 // pred_check_branch
          %350 = sbr.rel (%p348) target = $region24
        $region23: #{tpu_custom_call.1} parent=11 // pred_region
          %352 = vsyncadd [#allocation12], 0
          %s353 = sshll.u32 %s5, 4
          %s354 = int_to_ptr.hbm [resolvable:$true] %s353
          %s355 = sshll.u32 [#allocation13], 4
          %s356 = int_to_ptr.vmem [resolvable:$true] %s355
          %361 = dma.hbm_to_vmem [thread:$0]  %s354, 256, %s356, [#allocation12], 64, 64, 4
        $region24: #{tpu_custom_call.1} parent=11 // pred_fallthru
          _
        // Predicated region
        $region25: #{tpu_custom_call.1} parent=11 // pred_check
          %p362 = pneg %p204
        $region26: #{tpu_custom_call.1} parent=11 // pred_check_branch
          %364 = sbr.rel (%p362) target = $region28
        $region27: #{tpu_custom_call.1} parent=11 // pred_region
          _
        $region28: #{tpu_custom_call.1} parent=11 // pred_fallthru
          _
        // Predicated region
        $region29: #{tpu_custom_call.1} parent=11 // pred_check
          %p365 = pneg %p225
        $region30: #{tpu_custom_call.1} parent=11 // pred_check_branch
          %367 = sbr.rel (%p365) target = $region32
        $region31: #{tpu_custom_call.1} parent=11 // pred_region
          %369 = vsyncadd [#allocation15], 0
          %s370 = sshll.u32 %s7, 4
          %s371 = int_to_ptr.hbm [resolvable:$true] %s370
          %s372 = sshll.u32 [#allocation14], 4
          %s373 = int_to_ptr.vmem [resolvable:$true] %s372
          %378 = dma.hbm_to_vmem [thread:$0]  %s371, 256, %s373, [#allocation15], 64, 64, 4
        $region32: #{tpu_custom_call.1} parent=11 // pred_fallthru
          _
        // Predicated region
        $region33: #{tpu_custom_call.1} parent=11 // pred_check
          %p379 = pneg %p246
        $region34: #{tpu_custom_call.1} parent=11 // pred_check_branch
          %381 = sbr.rel (%p379) target = $region36
        $region35: #{tpu_custom_call.1} parent=11 // pred_region
          _
        $region36: #{tpu_custom_call.1} parent=11 // pred_fallthru
          _
        // Predicated region
        $region37: #{tpu_custom_call.1} parent=11 // pred_check
          %p382 = pneg %p267
        $region38: #{tpu_custom_call.1} parent=11 // pred_check_branch
          %384 = sbr.rel (%p382) target = $region40
        $region39: #{tpu_custom_call.1} parent=11 // pred_region
          %386 = vsyncadd [#allocation15], 0
          %s387 = sshll.u32 %s9, 4
          %s388 = int_to_ptr.hbm [resolvable:$true] %s387
          %s389 = sshll.u32 [#allocation16], 4
          %s390 = int_to_ptr.vmem [resolvable:$true] %s389
          %395 = dma.hbm_to_vmem [thread:$0]  %s388, 256, %s390, [#allocation15], 64, 64, 4
        $region40: #{tpu_custom_call.1} parent=11 // pred_fallthru
          _
        // Predicated region
        $region41: #{tpu_custom_call.1} parent=11 // pred_check
          %p396 = pneg %p288
        $region42: #{tpu_custom_call.1} parent=11 // pred_check_branch
          %398 = sbr.rel (%p396) target = $region44
        $region43: #{tpu_custom_call.1} parent=11 // pred_region
          _
        $region44: #{tpu_custom_call.1} parent=11 // pred_fallthru
          _
      $region12: #{tpu_custom_call.1} parent=5 // pred_fallthru
        _
      %p399 = scmp.lt.s32.totalorder %s28, 2
      // Predicated region
      $region45: #{tpu_custom_call.1} parent=5 // pred_check
        %p400 = pneg %p399
      $region46: #{tpu_custom_call.1} parent=5 // pred_check_branch
        %402 = sbr.rel (%p400) target = $region48
      $region47: #{tpu_custom_call.1} parent=5 // pred_region
        // Predicated region
        $region49: #{tpu_custom_call.1} parent=47 // pred_check
          %p403 = pneg %p62
        $region50: #{tpu_custom_call.1} parent=47 // pred_check_branch
          %405 = sbr.rel (%p403) target = $region52
        $region51: #{tpu_custom_call.1} parent=47 // pred_region
          %s406 = sand.u32 %s52, 1
          %s407 = scalar_lea.sflag [#allocation6], %s406
          %s408 = sand.u32 %s52, 1
          %s409 = smul.addr %s408, 8
          %s410 = scalar_lea.vmem [#allocation5], %s409
          %412 = vsyncadd %s407, 0
          %s413 = sadd.s32 %s36, %s35
          %s414 = smul.addr %s413, 8
          %s415 = scalar_lea.hbm %s0, %s414
          %s417 = sshll.u32 %s415, 4
          %s418 = int_to_ptr.hbm [resolvable:$true] %s417
          %s419 = sshll.u32 %s410, 4
          %s420 = int_to_ptr.vmem [resolvable:$true] %s419
          %422 = dma.hbm_to_vmem [thread:$0]  %s418, 128, %s420, %s407
        $region52: #{tpu_custom_call.1} parent=47 // pred_fallthru
          _
        // Predicated region
        $region53: #{tpu_custom_call.1} parent=47 // pred_check
          %p423 = pneg %p88
        $region54: #{tpu_custom_call.1} parent=47 // pred_check_branch
          %425 = sbr.rel (%p423) target = $region56
        $region55: #{tpu_custom_call.1} parent=47 // pred_region
          %s426 = sand.u32 %s28, 1
          %s427 = scalar_lea.sflag [#allocation9], %s426
          %s428 = sand.u32 %s78, 1
          %s429 = smul.addr %s428, 8
          %s430 = scalar_lea.vmem [#allocation8], %s429
          %432 = vsyncadd %s427, 0
          %s433 = smul.addr %s35, 8
          %s434 = scalar_lea.hbm %s1, %s433
          %s436 = sshll.u32 %s434, 4
          %s437 = int_to_ptr.hbm [resolvable:$true] %s436
          %s438 = sshll.u32 %s430, 4
          %s439 = int_to_ptr.vmem [resolvable:$true] %s438
          %441 = dma.hbm_to_vmem [thread:$0]  %s437, 128, %s439, %s427
        $region56: #{tpu_custom_call.1} parent=47 // pred_fallthru
          _
        // Predicated region
        $region57: #{tpu_custom_call.1} parent=47 // pred_check
          %p442 = pneg %p114
        $region58: #{tpu_custom_call.1} parent=47 // pred_check_branch
          %444 = sbr.rel (%p442) target = $region60
        $region59: #{tpu_custom_call.1} parent=47 // pred_region
          %s445 = sand.u32 %s28, 1
          %s446 = scalar_lea.sflag [#allocation9], %s445
          %s447 = sand.u32 %s104, 1
          %s448 = smul.addr %s447, 8
          %s449 = scalar_lea.vmem [#allocation10], %s448
          %451 = vsyncadd %s446, 0
          %s452 = smul.addr %s35, 8
          %s453 = scalar_lea.hbm %s2, %s452
          %s455 = sshll.u32 %s453, 4
          %s456 = int_to_ptr.hbm [resolvable:$true] %s455
          %s457 = sshll.u32 %s449, 4
          %s458 = int_to_ptr.vmem [resolvable:$true] %s457
          %460 = dma.hbm_to_vmem [thread:$0]  %s456, 128, %s458, %s446
        $region60: #{tpu_custom_call.1} parent=47 // pred_fallthru
          _
      $region48: #{tpu_custom_call.1} parent=5 // pred_fallthru
        _
      %p461 = scmp.le.s32.totalorder 1, %s28
      %p462 = scmp.lt.s32.totalorder %s28, 3
      %p463 = pnand %p461, %p462
      %p464 = pneg %p463
      // Predicated region
      $region61: #{tpu_custom_call.1} parent=5 // pred_check
        _
      $region62: #{tpu_custom_call.1} parent=5 // pred_check_branch
        %466 = sbr.rel (%p463) target = $region64
      $region63: #{tpu_custom_call.1} parent=5 // pred_region
        %s467 = ssub.s32 %s28, 1
        %s468 = sand.u32 %s55, 1
        %s469 = scalar_lea.sflag [#allocation6], %s468
        %s470 = sand.u32 %s55, 1
        %s471 = smul.addr %s470, 8
        %s472 = scalar_lea.vmem [#allocation5], %s471
        // Predicated region
        $region65: #{tpu_custom_call.1} parent=63 // pred_check
          %p473 = pneg %p68
        $region66: #{tpu_custom_call.1} parent=63 // pred_check_branch
          %475 = sbr.rel (%p473) target = $region68
        $region67: #{tpu_custom_call.1} parent=63 // pred_region
          %477 = dma.done %s469, 128
        $region68: #{tpu_custom_call.1} parent=63 // pred_fallthru
          _
        %s478 = sand.u32 %s33, 1
        %s479 = scalar_lea.sflag [#allocation9], %s478
        %s480 = sand.u32 %s81, 1
        %s481 = smul.addr %s480, 8
        %s482 = scalar_lea.vmem [#allocation8], %s481
        // Predicated region
        $region69: #{tpu_custom_call.1} parent=63 // pred_check
          %p483 = pneg %p94
        $region70: #{tpu_custom_call.1} parent=63 // pred_check_branch
          %485 = sbr.rel (%p483) target = $region72
        $region71: #{tpu_custom_call.1} parent=63 // pred_region
          %487 = dma.done %s479, 128
        $region72: #{tpu_custom_call.1} parent=63 // pred_fallthru
          _
        %s488 = sand.u32 %s33, 1
        %s489 = scalar_lea.sflag [#allocation9], %s488
        %s490 = sand.u32 %s107, 1
        %s491 = smul.addr %s490, 8
        %s492 = scalar_lea.vmem [#allocation10], %s491
        // Predicated region
        $region73: #{tpu_custom_call.1} parent=63 // pred_check
          %p493 = pneg %p120
        $region74: #{tpu_custom_call.1} parent=63 // pred_check_branch
          %495 = sbr.rel (%p493) target = $region76
        $region75: #{tpu_custom_call.1} parent=63 // pred_region
          %497 = dma.done %s489, 128
        $region76: #{tpu_custom_call.1} parent=63 // pred_fallthru
          _
        // Predicated region
        $region77: #{tpu_custom_call.1} parent=63 // pred_check
          %p498 = pneg %p141
        $region78: #{tpu_custom_call.1} parent=63 // pred_check_branch
          %500 = sbr.rel (%p498) target = $region80
        $region79: #{tpu_custom_call.1} parent=63 // pred_region
          %502 = dma.done [#allocation12], 256
        $region80: #{tpu_custom_call.1} parent=63 // pred_fallthru
          _
        // Predicated region
        $region81: #{tpu_custom_call.1} parent=63 // pred_check
          %p503 = pneg %p183
        $region82: #{tpu_custom_call.1} parent=63 // pred_check_branch
          %505 = sbr.rel (%p503) target = $region84
        $region83: #{tpu_custom_call.1} parent=63 // pred_region
          %507 = dma.done [#allocation12], 256
        $region84: #{tpu_custom_call.1} parent=63 // pred_fallthru
          _
        // Predicated region
        $region85: #{tpu_custom_call.1} parent=63 // pred_check
          %p508 = pneg %p225
        $region86: #{tpu_custom_call.1} parent=63 // pred_check_branch
          %510 = sbr.rel (%p508) target = $region88
        $region87: #{tpu_custom_call.1} parent=63 // pred_region
          %512 = dma.done [#allocation15], 256
        $region88: #{tpu_custom_call.1} parent=63 // pred_fallthru
          _
        // Predicated region
        $region89: #{tpu_custom_call.1} parent=63 // pred_check
          %p513 = pneg %p267
        $region90: #{tpu_custom_call.1} parent=63 // pred_check_branch
          %515 = sbr.rel (%p513) target = $region92
        $region91: #{tpu_custom_call.1} parent=63 // pred_region
          %517 = dma.done [#allocation15], 256
        $region92: #{tpu_custom_call.1} parent=63 // pred_fallthru
          _
        %s518 = sand.u32 %s55, 1
        %s519 = scalar_lea.sflag [#allocation6], %s518
        %s520 = sand.u32 %s55, 1
        %s521 = smul.addr %s520, 8
        %s522 = scalar_lea.vmem [#allocation5], %s521
        %p523 = pneg %p68
        %p524 = pneg %p65
        %s525 = sand.u32 %s33, 1
        %s526 = scalar_lea.sflag [#allocation9], %s525
        %s527 = sand.u32 %s81, 1
        %s528 = smul.addr %s527, 8
        %s529 = scalar_lea.vmem [#allocation8], %s528
        %p530 = pneg %p94
        %p531 = pneg %p91
        %s532 = sand.u32 %s33, 1
        %s533 = scalar_lea.sflag [#allocation9], %s532
        %s534 = sand.u32 %s107, 1
        %s535 = smul.addr %s534, 8
        %s536 = scalar_lea.vmem [#allocation10], %s535
        %p537 = pneg %p120
        %p538 = pneg %p117
        %p539 = pneg %p141
        %p540 = pneg %p138
        %p541 = pneg %p162
        %p542 = pneg %p159
        %p543 = pneg %p183
        %p544 = pneg %p180
        %p545 = pneg %p204
        %p546 = pneg %p201
        %p547 = pneg %p225
        %p548 = pneg %p222
        %p549 = pneg %p246
        %p550 = pneg %p243
        %p551 = pneg %p267
        %p552 = pneg %p264
        %p553 = pneg %p288
        %p554 = pneg %p285
        %p555 = pneg %p316
        %p556 = pneg %p313
        %s557 = sand.u32 %s303, 1
        %s558 = scalar_lea.sflag [#allocation7], %s557
        %s559 = sand.u32 %s303, 1
        %s560 = smul.addr %s559, 8
        %s561 = scalar_lea.vmem [#allocation17], %s560
        %p563 = scmp.eq.s32.totalorder %s38, 0
        // Predicated region
        $region93: #{tpu_custom_call.1} parent=63 // pred_check
          %p564 = pneg %p563
        $region94: #{tpu_custom_call.1} parent=63 // pred_check_branch
          %566 = sbr.rel (%p564) target = $region96
        $region95: #{tpu_custom_call.1} parent=63 // pred_region
          %v567 = vld [vmem:[%s482] sm:$0xff]
          %v568 = vpack.c.bf16 %v567, %v567
          %v569 = vld [vmem:[#allocation13] sm:$0xf]
          %v570 = vld [vmem:[#allocation13 + $0x4] sm:$0xf]
          %v571 = vld [vmem:[#allocation13 + $0x8] sm:$0xf]
          %v572 = vld [vmem:[#allocation13 + $0xc] sm:$0xf]
          %v573 = vld [vmem:[%s6] sm:$0x1]
          %v575 = vperm.slane %v573, 0
          %v581 = vunpack.c.l.b16 %v569
          %v582 = vunpack.c.l.b16 %v570
          %v583 = vunpack.c.l.b16 %v571
          %v584 = vunpack.c.l.b16 %v572
          %v585 = vpack.c.b16 %v582, %v581
          %v586 = vpack.c.b16 %v584, %v583
          %vm589 = vcmask 261120
          %v591 = vsel %vm589, %v568, 0
          %593 = vmatpush.bf16.msra.mxu0 0
          %594 = vmatpush.bf16.msra.mxu0 0
          %595 = vmatpush.bf16.msra.mxu0 0
          %596 = vmatpush.bf16.msra.mxu0 0
          %597 = vmatpush.bf16.msra.mxu0 0
          %598 = vmatpush.bf16.msra.mxu0 0
          %599 = vmatpush.bf16.msra.mxu0 %v586
          %600 = vmatpush.bf16.msra.mxu0 %v585
          %601 = vmatmul.bf16.gmra.mxu0 %v591
          %v602 = vpop.f32.mrf.mxu0
          %v603 = vadd.f32 %v575, %v602
          %v604 = vpop.f32.mrf.mxu0
          %605 = vdwg.mxu0
          %v606 = vpack.c.bf16 %v603, %v603
          %vm607 = vcmask 257024
          %608 = vst.msk [vmem:[#allocation2] sm:$0xf] %vm607, %v606
          %v609 = vld [vmem:[%s492] sm:$0xff]
          %v610 = vpack.c.bf16 %v609, %v609
          %v611 = vld [vmem:[#allocation14] sm:$0xf]
          %v612 = vld [vmem:[#allocation14 + $0x4] sm:$0xf]
          %v613 = vld [vmem:[#allocation14 + $0x8] sm:$0xf]
          %v614 = vld [vmem:[#allocation14 + $0xc] sm:$0xf]
          %v615 = vld [vmem:[%s8] sm:$0x1]
          %v617 = vperm.slane %v615, 0
          %v623 = vunpack.c.l.b16 %v611
          %v624 = vunpack.c.l.b16 %v612
          %v625 = vunpack.c.l.b16 %v613
          %v626 = vunpack.c.l.b16 %v614
          %v627 = vpack.c.b16 %v624, %v623
          %v628 = vpack.c.b16 %v626, %v625
          %v632 = vsel %vm589, %v610, 0
          %634 = vmatpush.bf16.msra.mxu0 0
          %635 = vmatpush.bf16.msra.mxu0 0
          %636 = vmatpush.bf16.msra.mxu0 0
          %637 = vmatpush.bf16.msra.mxu0 0
          %638 = vmatpush.bf16.msra.mxu0 0
          %639 = vmatpush.bf16.msra.mxu0 0
          %640 = vmatpush.bf16.msra.mxu0 %v628
          %641 = vmatpush.bf16.msra.mxu0 %v627
          %642 = vmatmul.bf16.gmra.mxu0 %v632
          %v643 = vpop.f32.mrf.mxu0
          %v644 = vadd.f32 %v617, %v643
          %v645 = vpop.f32.mrf.mxu0
          %646 = vdwg.mxu0
          %v647 = vpack.c.bf16 %v644, %v644
          %648 = vst.msk [vmem:[#allocation3] sm:$0xf] %vm607, %v647
        $region96: #{tpu_custom_call.1} parent=63 // pred_fallthru
          _
        %v649 = vld [vmem:[%s472] sm:$0xff]
        %v650 = vpack.c.bf16 %v649, %v649
        %v651 = vld [vmem:[#allocation11] sm:$0xf]
        %v652 = vld [vmem:[#allocation11 + $0x4] sm:$0xf]
        %v653 = vld [vmem:[#allocation11 + $0x8] sm:$0xf]
        %v654 = vld [vmem:[#allocation11 + $0xc] sm:$0xf]
        %v655 = vld [vmem:[%s4] sm:$0x1]
        %v657 = vperm.slane %v655, 0
        %v663 = vunpack.c.l.b16 %v651
        %v664 = vunpack.c.l.b16 %v652
        %v665 = vunpack.c.l.b16 %v653
        %v666 = vunpack.c.l.b16 %v654
        %v667 = vpack.c.b16 %v664, %v663
        %v668 = vpack.c.b16 %v666, %v665
        %vm671 = vcmask 261120
        %v673 = vsel %vm671, %v650, 0
        %675 = vmatpush.bf16.msra.mxu0 0
        %676 = vmatpush.bf16.msra.mxu0 0
        %677 = vmatpush.bf16.msra.mxu0 0
        %678 = vmatpush.bf16.msra.mxu0 0
        %679 = vmatpush.bf16.msra.mxu0 0
        %680 = vmatpush.bf16.msra.mxu0 0
        %681 = vmatpush.bf16.msra.mxu0 %v668
        %682 = vmatpush.bf16.msra.mxu0 %v667
        %683 = vmatmul.bf16.gmra.mxu0 %v673
        %v684 = vpop.f32.mrf.mxu0
        %v685 = vadd.f32 %v657, %v684
        %v686 = vpop.f32.mrf.mxu0
        %687 = vdwg.mxu0
        %v688 = vld [vmem:[#allocation2] sm:$0xf]
        %v689 = vld [vmem:[#allocation3] sm:$0xf]
        %v690 = vpack.c.bf16 %v685, %v685
        %vm691 = vcmask 64512
        %v693 = vsel %vm691, %v690, 0
        %v696 = vsel %vm691, %v688, 0
        %698 = vmatpush.bf16.xpose.msra.mxu0 0
        %699 = vmatpush.bf16.xpose.msra.mxu0 0
        %700 = vmatpush.bf16.xpose.msra.mxu0 0
        %701 = vmatpush.bf16.xpose.msra.mxu0 0
        %702 = vmatpush.bf16.xpose.msra.mxu0 0
        %703 = vmatpush.bf16.xpose.msra.mxu0 0
        %704 = vmatpush.bf16.xpose.msra.mxu0 0
        %705 = vmatpush.bf16.xpose.msra.mxu0 %v696
        %706 = vmatmul.bf16.gmra.mxu0 %v693
        %v707 = vpop.f32.mrf.mxu0
        %v708 = vadd.f32 0.0, %v707
        %v709 = vpop.f32.mrf.mxu0
        %710 = vdwg.mxu0
        %v711 = vsel %vm691, %v708, -inf
        %712 = vmax.xlane.f32.xlu0 %v711
        %v713 = vpop.xlane.xlu0 %712
        %v714 = vsub.f32 %v708, %v713
        %v715 = vmul.f32 %v714, 1.442695
        %v716 = vpow.pop %v715
        %v717 = vsel %vm691, %v716, 0.0
        %718 = vadd.xlane.f32.xlu0 %v717
        %v719 = vpop.xlane.xlu0 %718
        %v720 = vrcp.pop %v719
        %v721 = vmul.f32 %v719, %v720
        %v722 = vsub.f32 1.0, %v721
        %v723 = vmul.f32 %v720, %v722
        %v724 = vadd.f32 %v720, %v723
        %vm725 = vweird.f32 %v719
        %vm726 = vweird.f32 %v720
        %vm727 = vmor %vm725, %vm726
        %v728 = vsel %vm727, %v720, %v724
        %v729 = vand.u32 2147483647, %v719
        %vm730 = vcmp.eq.f32.partialorder %v729, 8.507059e+37
        %v731 = vand.u32 %v719, 2147483648
        %v732 = vor.u32 1.1754944e-38, %v731
        %v733 = vsel %vm730, %v732, %v728
        %v734 = vmul.f32 1.0, %v733
        %v735 = vmul.f32 %v716, %v734
        %v736 = vpack.c.bf16 %v735, %v735
        %v738 = vsel %vm691, %v736, 0
        %vm740 = vcmask 1043456
        %v742 = vsel %vm740, %v689, 0
        %744 = vmatpush.bf16.msra.mxu0 0
        %745 = vmatpush.bf16.msra.mxu0 0
        %746 = vmatpush.bf16.msra.mxu0 0
        %747 = vmatpush.bf16.msra.mxu0 0
        %748 = vmatpush.bf16.msra.mxu0 0
        %749 = vmatpush.bf16.msra.mxu0 0
        %750 = vmatpush.bf16.msra.mxu0 0
        %751 = vmatpush.bf16.msra.mxu0 %v742
        %752 = vmatmul.bf16.gmra.mxu0 %v738
        %v753 = vpop.f32.mrf.mxu0
        %v754 = vadd.f32 0.0, %v753
        %v755 = vpop.f32.mrf.mxu0
        %756 = vdwg.mxu0
        %v757 = vpack.c.bf16 %v754, %v754
        %vm758 = vcmask 60416
        %759 = vst.msk [vmem:[#allocation4] sm:$0xf] %vm758, %v757
        %761 = vrot.lane.b32.xlu0 %v690, 120
        %v762 = vpop.permute.xlu0 %761
        %v764 = vunpack.c.l.b16 %v688
        %v765 = vpack.c.b16 %v764, %v764
        %766 = vrot.lane.b32.xlu0 %v765, 120
        %v767 = vpop.permute.xlu0 %766
        %v769 = vsel %vm691, %v762, 0
        %v772 = vsel %vm691, %v767, 0
        %774 = vmatpush.bf16.xpose.msra.mxu0 0
        %775 = vmatpush.bf16.xpose.msra.mxu0 0
        %776 = vmatpush.bf16.xpose.msra.mxu0 0
        %777 = vmatpush.bf16.xpose.msra.mxu0 0
        %778 = vmatpush.bf16.xpose.msra.mxu0 0
        %779 = vmatpush.bf16.xpose.msra.mxu0 0
        %780 = vmatpush.bf16.xpose.msra.mxu0 0
        %781 = vmatpush.bf16.xpose.msra.mxu0 %v772
        %782 = vmatmul.bf16.gmra.mxu0 %v769
        %v783 = vpop.f32.mrf.mxu0
        %v784 = vadd.f32 0.0, %v783
        %v785 = vpop.f32.mrf.mxu0
        %786 = vdwg.mxu0
        %v787 = vsel %vm691, %v784, -inf
        %788 = vmax.xlane.f32.xlu0 %v787
        %v789 = vpop.xlane.xlu0 %788
        %v790 = vsub.f32 %v784, %v789
        %v791 = vmul.f32 %v790, 1.442695
        %v792 = vpow.pop %v791
        %v793 = vsel %vm691, %v792, 0.0
        %794 = vadd.xlane.f32.xlu0 %v793
        %v795 = vpop.xlane.xlu0 %794
        %v796 = vrcp.pop %v795
        %v797 = vmul.f32 %v795, %v796
        %v798 = vsub.f32 1.0, %v797
        %v799 = vmul.f32 %v796, %v798
        %v800 = vadd.f32 %v796, %v799
        %vm801 = vweird.f32 %v795
        %vm802 = vweird.f32 %v796
        %vm803 = vmor %vm801, %vm802
        %v804 = vsel %vm803, %v796, %v800
        %v805 = vand.u32 2147483647, %v795
        %vm806 = vcmp.eq.f32.partialorder %v805, 8.507059e+37
        %v807 = vand.u32 %v795, 2147483648
        %v808 = vor.u32 1.1754944e-38, %v807
        %v809 = vsel %vm806, %v808, %v804
        %v810 = vmul.f32 1.0, %v809
        %v811 = vmul.f32 %v792, %v810
        %v812 = vpack.c.bf16 %v811, %v811
        %v814 = vunpack.c.l.b16 %v689
        %v815 = vpack.c.b16 %v814, %v814
        %816 = vrot.lane.b32.xlu0 %v815, 120
        %v817 = vpop.permute.xlu0 %816
        %v819 = vsel %vm691, %v812, 0
        %v822 = vsel %vm740, %v817, 0
        %824 = vmatpush.bf16.msra.mxu0 0
        %825 = vmatpush.bf16.msra.mxu0 0
        %826 = vmatpush.bf16.msra.mxu0 0
        %827 = vmatpush.bf16.msra.mxu0 0
        %828 = vmatpush.bf16.msra.mxu0 0
        %829 = vmatpush.bf16.msra.mxu0 0
        %830 = vmatpush.bf16.msra.mxu0 0
        %831 = vmatpush.bf16.msra.mxu0 %v822
        %832 = vmatmul.bf16.gmra.mxu0 %v819
        %v833 = vpop.f32.mrf.mxu0
        %v834 = vadd.f32 0.0, %v833
        %v835 = vpop.f32.mrf.mxu0
        %836 = vdwg.mxu0
        %v837 = vpack.c.bf16 %v834, %v834
        %839 = vrot.lane.b32.xlu0 %v837, 8
        %v840 = vpop.permute.xlu0 %839
        %vm842 = vcmask 126016
        %843 = vst.msk [vmem:[#allocation4] sm:$0xf] %vm842, %v840
        %844 = vrot.lane.b32.xlu0 %v690, 112
        %v845 = vpop.permute.xlu0 %844
        %846 = vrot.lane.b32.xlu0 %v765, 112
        %v847 = vpop.permute.xlu0 %846
        %v849 = vsel %vm691, %v845, 0
        %v852 = vsel %vm691, %v847, 0
        %854 = vmatpush.bf16.xpose.msra.mxu0 0
        %855 = vmatpush.bf16.xpose.msra.mxu0 0
        %856 = vmatpush.bf16.xpose.msra.mxu0 0
        %857 = vmatpush.bf16.xpose.msra.mxu0 0
        %858 = vmatpush.bf16.xpose.msra.mxu0 0
        %859 = vmatpush.bf16.xpose.msra.mxu0 0
        %860 = vmatpush.bf16.xpose.msra.mxu0 0
        %861 = vmatpush.bf16.xpose.msra.mxu0 %v852
        %862 = vmatmul.bf16.gmra.mxu0 %v849
        %v863 = vpop.f32.mrf.mxu0
        %v864 = vadd.f32 0.0, %v863
        %v865 = vpop.f32.mrf.mxu0
        %866 = vdwg.mxu0
        %v867 = vsel %vm691, %v864, -inf
        %868 = vmax.xlane.f32.xlu0 %v867
        %v869 = vpop.xlane.xlu0 %868
        %v870 = vsub.f32 %v864, %v869
        %v871 = vmul.f32 %v870, 1.442695
        %v872 = vpow.pop %v871
        %v873 = vsel %vm691, %v872, 0.0
        %874 = vadd.xlane.f32.xlu0 %v873
        %v875 = vpop.xlane.xlu0 %874
        %v876 = vrcp.pop %v875
        %v877 = vmul.f32 %v875, %v876
        %v878 = vsub.f32 1.0, %v877
        %v879 = vmul.f32 %v876, %v878
        %v880 = vadd.f32 %v876, %v879
        %vm881 = vweird.f32 %v875
        %vm882 = vweird.f32 %v876
        %vm883 = vmor %vm881, %vm882
        %v884 = vsel %vm883, %v876, %v880
        %v885 = vand.u32 2147483647, %v875
        %vm886 = vcmp.eq.f32.partialorder %v885, 8.507059e+37
        %v887 = vand.u32 %v875, 2147483648
        %v888 = vor.u32 1.1754944e-38, %v887
        %v889 = vsel %vm886, %v888, %v884
        %v890 = vmul.f32 1.0, %v889
        %v891 = vmul.f32 %v872, %v890
        %v892 = vpack.c.bf16 %v891, %v891
        %893 = vrot.lane.b32.xlu0 %v815, 112
        %v894 = vpop.permute.xlu0 %893
        %v896 = vsel %vm691, %v892, 0
        %v899 = vsel %vm740, %v894, 0
        %901 = vmatpush.bf16.msra.mxu0 0
        %902 = vmatpush.bf16.msra.mxu0 0
        %903 = vmatpush.bf16.msra.mxu0 0
        %904 = vmatpush.bf16.msra.mxu0 0
        %905 = vmatpush.bf16.msra.mxu0 0
        %906 = vmatpush.bf16.msra.mxu0 0
        %907 = vmatpush.bf16.msra.mxu0 0
        %908 = vmatpush.bf16.msra.mxu0 %v899
        %909 = vmatmul.bf16.gmra.mxu0 %v896
        %v910 = vpop.f32.mrf.mxu0
        %v911 = vadd.f32 0.0, %v910
        %v912 = vpop.f32.mrf.mxu0
        %913 = vdwg.mxu0
        %v914 = vpack.c.bf16 %v911, %v911
        %916 = vrot.lane.b32.xlu0 %v914, 16
        %v917 = vpop.permute.xlu0 %916
        %vm919 = vcmask 191616
        %920 = vst.msk [vmem:[#allocation4] sm:$0xf] %vm919, %v917
        %921 = vrot.lane.b32.xlu0 %v690, 104
        %v922 = vpop.permute.xlu0 %921
        %923 = vrot.lane.b32.xlu0 %v765, 104
        %v924 = vpop.permute.xlu0 %923
        %v926 = vsel %vm691, %v922, 0
        %v929 = vsel %vm691, %v924, 0
        %931 = vmatpush.bf16.xpose.msra.mxu0 0
        %932 = vmatpush.bf16.xpose.msra.mxu0 0
        %933 = vmatpush.bf16.xpose.msra.mxu0 0
        %934 = vmatpush.bf16.xpose.msra.mxu0 0
        %935 = vmatpush.bf16.xpose.msra.mxu0 0
        %936 = vmatpush.bf16.xpose.msra.mxu0 0
        %937 = vmatpush.bf16.xpose.msra.mxu0 0
        %938 = vmatpush.bf16.xpose.msra.mxu0 %v929
        %939 = vmatmul.bf16.gmra.mxu0 %v926
        %v940 = vpop.f32.mrf.mxu0
        %v941 = vadd.f32 0.0, %v940
        %v942 = vpop.f32.mrf.mxu0
        %943 = vdwg.mxu0
        %v944 = vsel %vm691, %v941, -inf
        %945 = vmax.xlane.f32.xlu0 %v944
        %v946 = vpop.xlane.xlu0 %945
        %v947 = vsub.f32 %v941, %v946
        %v948 = vmul.f32 %v947, 1.442695
        %v949 = vpow.pop %v948
        %v950 = vsel %vm691, %v949, 0.0
        %951 = vadd.xlane.f32.xlu0 %v950
        %v952 = vpop.xlane.xlu0 %951
        %v953 = vrcp.pop %v952
        %v954 = vmul.f32 %v952, %v953
        %v955 = vsub.f32 1.0, %v954
        %v956 = vmul.f32 %v953, %v955
        %v957 = vadd.f32 %v953, %v956
        %vm958 = vweird.f32 %v952
        %vm959 = vweird.f32 %v953
        %vm960 = vmor %vm958, %vm959
        %v961 = vsel %vm960, %v953, %v957
        %v962 = vand.u32 2147483647, %v952
        %vm963 = vcmp.eq.f32.partialorder %v962, 8.507059e+37
        %v964 = vand.u32 %v952, 2147483648
        %v965 = vor.u32 1.1754944e-38, %v964
        %v966 = vsel %vm963, %v965, %v961
        %v967 = vmul.f32 1.0, %v966
        %v968 = vmul.f32 %v949, %v967
        %v969 = vpack.c.bf16 %v968, %v968
        %970 = vrot.lane.b32.xlu0 %v815, 104
        %v971 = vpop.permute.xlu0 %970
        %v973 = vsel %vm691, %v969, 0
        %v976 = vsel %vm740, %v971, 0
        %978 = vmatpush.bf16.msra.mxu0 0
        %979 = vmatpush.bf16.msra.mxu0 0
        %980 = vmatpush.bf16.msra.mxu0 0
        %981 = vmatpush.bf16.msra.mxu0 0
        %982 = vmatpush.bf16.msra.mxu0 0
        %983 = vmatpush.bf16.msra.mxu0 0
        %984 = vmatpush.bf16.msra.mxu0 0
        %985 = vmatpush.bf16.msra.mxu0 %v976
        %986 = vmatmul.bf16.gmra.mxu0 %v973
        %v987 = vpop.f32.mrf.mxu0
        %v988 = vadd.f32 0.0, %v987
        %v989 = vpop.f32.mrf.mxu0
        %990 = vdwg.mxu0
        %v991 = vpack.c.bf16 %v988, %v988
        %993 = vrot.lane.b32.xlu0 %v991, 24
        %v994 = vpop.permute.xlu0 %993
        %vm996 = vcmask 257216
        %997 = vst.msk [vmem:[#allocation4] sm:$0xf] %vm996, %v994
        %v998 = vld [vmem:[#allocation4] sm:$0xf]
        %v999 = vld [vmem:[#allocation16] sm:$0xf]
        %v1000 = vld [vmem:[#allocation16 + $0x4] sm:$0xf]
        %v1001 = vld [vmem:[#allocation16 + $0x8] sm:$0xf]
        %v1002 = vld [vmem:[#allocation16 + $0xc] sm:$0xf]
        %v1003 = vld [vmem:[%s10] sm:$0x1]
        %v1005 = vperm.slane %v1003, 0
        %v1011 = vunpack.c.l.b16 %v999
        %v1012 = vunpack.c.l.b16 %v1000
        %v1013 = vunpack.c.l.b16 %v1001
        %v1014 = vunpack.c.l.b16 %v1002
        %v1015 = vpack.c.b16 %v1012, %v1011
        %v1016 = vpack.c.b16 %v1014, %v1013
        %v1020 = vsel %vm671, %v998, 0
        %1022 = vmatpush.bf16.msra.mxu0 0
        %1023 = vmatpush.bf16.msra.mxu0 0
        %1024 = vmatpush.bf16.msra.mxu0 0
        %1025 = vmatpush.bf16.msra.mxu0 0
        %1026 = vmatpush.bf16.msra.mxu0 0
        %1027 = vmatpush.bf16.msra.mxu0 0
        %1028 = vmatpush.bf16.msra.mxu0 %v1016
        %1029 = vmatpush.bf16.msra.mxu0 %v1015
        %1030 = vmatmul.bf16.gmra.mxu0 %v1020
        %v1031 = vpop.f32.mrf.mxu0
        %v1032 = vadd.f32 %v1005, %v1031
        %v1033 = vpop.f32.mrf.mxu0
        %1034 = vdwg.mxu0
        %1035 = vst.msk [vmem:[%s561] sm:$0xff] %vm671, %v1032
        %s1036 = sand.u32 %s303, 1
        %s1037 = scalar_lea.sflag [#allocation7], %s1036
        %s1038 = sand.u32 %s303, 1
        %s1039 = smul.addr %s1038, 8
        %s1040 = scalar_lea.vmem [#allocation17], %s1039
        // Predicated region
        $region97: #{tpu_custom_call.1} parent=63 // pred_check
          %p1041 = pneg %p313
        $region98: #{tpu_custom_call.1} parent=63 // pred_check_branch
          %1043 = sbr.rel (%p1041) target = $region100
        $region99: #{tpu_custom_call.1} parent=63 // pred_region
          %1045 = vsyncadd %s1037, 0
          %s1046 = sadd.s32 %s38, %s37
          %s1047 = smul.addr %s1046, 8
          %s1048 = scalar_lea.hbm %s11, %s1047
          %s1050 = sshll.u32 %s1040, 4
          %s1051 = int_to_ptr.vmem [resolvable:$true] %s1050
          %s1052 = sshll.u32 %s1048, 4
          %s1053 = int_to_ptr.hbm [resolvable:$true] %s1052
          %1055 = dma.vmem_to_hbm [thread:$0]  %s1051, 128, %s1053, %s1037
        $region100: #{tpu_custom_call.1} parent=63 // pred_fallthru
          _
      $region64: #{tpu_custom_call.1} parent=5 // pred_fallthru
        _
      %p1056 = scmp.le.s32.totalorder 2, %s28
      // Predicated region
      $region101: #{tpu_custom_call.1} parent=5 // pred_check
        %p1057 = pneg %p1056
      $region102: #{tpu_custom_call.1} parent=5 // pred_check_branch
        %1059 = sbr.rel (%p1057) target = $region104
      $region103: #{tpu_custom_call.1} parent=5 // pred_region
        %s1060 = ssub.s32 %s28, 2
        // Predicated region
        $region105: #{tpu_custom_call.1} parent=103 // pred_check
          %p1061 = pneg %p319
        $region106: #{tpu_custom_call.1} parent=103 // pred_check_branch
          %1063 = sbr.rel (%p1061) target = $region108
        $region107: #{tpu_custom_call.1} parent=103 // pred_region
          %s1064 = sand.u32 %s304, 1
          %s1065 = scalar_lea.sflag [#allocation7], %s1064
          %s1066 = sand.u32 %s304, 1
          %s1067 = smul.addr %s1066, 8
          %s1068 = scalar_lea.vmem [#allocation17], %s1067
          %1070 = dma.done %s1065, 128
        $region108: #{tpu_custom_call.1} parent=103 // pred_fallthru
          _
      $region104: #{tpu_custom_call.1} parent=5 // pred_fallthru
        _
    $region6: #{tpu_custom_call.1} parent=1 // loop_footer
      %s32 = sadd.s32 1, %s28
    $region7: #{tpu_custom_call.1} parent=1 // loop_footer_branch
      %27 = sbr.rel target = $region3
    $region8: #{tpu_custom_call.1} parent=1 // loop_exit
      _
    %1071 = vsyncpa [#allocation6], 1
    %s1072 = scalar_lea.sflag [#allocation6], 1
    %1073 = vsyncpa %s1072, 1
    %1074 = vsyncpa [#allocation9], 1
    %s1075 = scalar_lea.sflag [#allocation9], 1
    %1076 = vsyncpa %s1075, 1
    %1077 = vsyncpa [#allocation12], 1
    %1078 = vsyncpa [#allocation15], 1
    %1079 = vsyncpa [#allocation7], 1
    %s1080 = scalar_lea.sflag [#allocation7], 1
    %1081 = vsyncpa %s1080, 1

</llo_original>
